<compile_context>
chip_gen: v7x
topology: tpu7x:2x2x1
jax: 0.10.0
libtpu: 0.0.40
codegen_flags: <defaults>
</compile_context>

<pallas_src>
import functools

import jax
import jax.numpy as jnp
import numpy as np
from jax.experimental import pallas as pl
from jax.experimental.pallas import tpu as pltpu


# ----------------------------------------------------------------------------
# Fused Pallas kernel
# ----------------------------------------------------------------------------
def _vmem_spec():
    return pl.BlockSpec(memory_space=pltpu.MemorySpace.VMEM)


def _fused_forward_kernel(n_gnn_layers, n0, e, idx_ref, emb_ref, *rest):
    adj_refs = rest[:n_gnn_layers]
    (w_sage_ref, b_sage_ref, ef_ref,
     w_d0s_ref, w_d0d_ref, w_d0e_ref,
     w_rest_ref, b_dec_ref, out_ref) = rest[n_gnn_layers:]

    vocab, feat = emb_ref.shape

    # --- consolidated int32 indices: [x_ids | pos_src | pos_dst] ------------
    idx = idx_ref[...]                                  # (n0 + 2e, 1) int32
    ids = idx[0:n0]
    src_ids = idx[n0:n0 + e]
    dst_ids = idx[n0 + e:n0 + 2 * e]

    # --- embedding lookup as one-hot @ table (vocab table is VMEM-resident) -
    # TODO(synk): for large vocabularies keep the table in HBM
    # (BlockSpec(memory_space=pl.ANY)) and DMA-gather rows instead of the
    # one-hot matmul; the current form is MXU-friendly only for tiny vocabs.
    vocab_iota = jax.lax.broadcasted_iota(jnp.int32, (n0, vocab), 1)
    onehot = (vocab_iota == ids).astype(jnp.float32)
    h = jnp.dot(onehot, emb_ref[...], preferred_element_type=jnp.float32)

    # --- GraphSAGE "mean" layers, fused self/neigh matmul --------------------
    # h_new = concat(h_dst, A_mean @ h_src) @ [W_self; W_neigh] + b
    # dst nodes are the first n_dst src nodes, so h_dst is a prefix of h.
    for li in range(n_gnn_layers):
        adj = adj_refs[li][...]
        n_dst = adj.shape[0]
        h_neigh = jnp.dot(adj, h, preferred_element_type=jnp.float32)
        h_cat = jnp.concatenate([h[:n_dst], h_neigh], axis=1)    # (n_dst, 2F)
        h = (jnp.dot(h_cat, w_sage_ref[li],
                     preferred_element_type=jnp.float32)
             + b_sage_ref[li])

    # --- positive-pair gather via one-hot selection matmuls (MXU) ------------
    n_final = h.shape[0]
    node_iota = jax.lax.broadcasted_iota(jnp.int32, (e, n_final), 1)
    sel_src = (node_iota == src_ids).astype(jnp.float32)
    sel_dst = (node_iota == dst_ids).astype(jnp.float32)
    h_src = jnp.dot(sel_src, h, preferred_element_type=jnp.float32)
    h_dst = jnp.dot(sel_dst, h, preferred_element_type=jnp.float32)

    # --- decoder layer 0: BN(eval) folded, split into three matmuls ----------
    # (no augmented-feature scratch concat, no zero-padded K rows)
    x = (jnp.dot(h_src, w_d0s_ref[...], preferred_element_type=jnp.float32)
         + jnp.dot(h_dst, w_d0d_ref[...], preferred_element_type=jnp.float32)
         + jnp.dot(ef_ref[...], w_d0e_ref[...],
                   preferred_element_type=jnp.float32)
         + b_dec_ref[0])
    x = jnp.maximum(x, 0.0)

    # --- remaining decoder layers (native 64-wide slabs) ---------------------
    # TODO(synk): dropout skipped (eval semantics).  When E grows, add a
    # parallel grid axis over the edge batch (2 TCs on v7x) and cast matmul
    # operands to bf16 (f32 accumulation) on v6e/v7x.
    n_rest = w_rest_ref.shape[0]
    for li in range(n_rest):
        x = (jnp.dot(x, w_rest_ref[li], preferred_element_type=jnp.float32)
             + b_dec_ref[li + 1])
        if li < n_rest - 1:
            x = jnp.maximum(x, 0.0)

    # --- 2-class softmax in closed form, single output store -----------------
    l0 = x[:, 0:1]
    l1 = x[:, 1:2]
    p1 = 1.0 / (1.0 + jnp.exp(l0 - l1))
    out_ref[...] = jnp.concatenate([1.0 - p1, p1], axis=1)


def fused_forward(x_ids, emb, adjs, sage_params, pos_src, pos_dst, edge_feat,
                  bn_scale, bn_shift, dec_params):
    """Runs the whole forward pass (post-parameter setup) in one kernel."""
    n_layers = len(adjs)
    feat = emb.shape[1]
    e, ef_dim = edge_feat.shape
    n0 = x_ids.shape[0]
    bn_dim = 2 * feat + ef_dim
    mlp_hid = dec_params[0][0].shape[1]
    n_dec = len(dec_params)

    # Pack SAGE weights: [W_self; W_neigh] stacked along K -> (L, 2F, F).
    for (ws, wn, _) in sage_params:
        assert ws.shape == (feat, feat) and wn.shape == (feat, feat)
    w_sage = jnp.stack([jnp.concatenate([ws, wn], axis=0)
                        for (ws, wn, _) in sage_params])
    b_sage = jnp.stack([b for (_, _, b) in sage_params])

    # Fold BatchNorm (eval) into decoder layer 0, then split its K dim into
    # three exact slabs (h_src rows, h_dst rows, edge_feat rows): no padding.
    w1, b1 = dec_params[0]
    w1f = w1 * bn_scale.reshape(-1, 1)
    b1f = b1 + bn_shift @ w1
    w_d0s = w1f[0:feat]
    w_d0d = w1f[feat:2 * feat]
    w_d0e = w1f[2 * feat:bn_dim]

    # Remaining decoder layers in one (n_dec-1, H, H) slab at native H=mlp_hid;
    # only the final layer's 2-wide output is zero-padded to H columns
    # (padding is numerically inert and ignored by the softmax).
    w_rest = jnp.zeros((n_dec - 1, mlp_hid, mlp_hid), jnp.float32)
    b_dec = jnp.zeros((n_dec, 1, mlp_hid), jnp.float32)
    b_dec = b_dec.at[0, :, :].set(b1f)
    for li in range(1, n_dec):
        w, b = dec_params[li]
        w_rest = w_rest.at[li - 1, :w.shape[0], :w.shape[1]].set(w)
        b_dec = b_dec.at[li, :, :b.shape[1]].set(b)

    # Consolidated int32 index operand: [x_ids | pos_src | pos_dst].
    idx = jnp.concatenate([x_ids.astype(jnp.int32),
                           pos_src.astype(jnp.int32),
                           pos_dst.astype(jnp.int32)]).reshape(-1, 1)

    kernel = functools.partial(_fused_forward_kernel, n_layers, n0, e)
    return pl.pallas_call(
        kernel,
        out_shape=jax.ShapeDtypeStruct((e, 2), jnp.float32),
        in_specs=[_vmem_spec()] * (10 + n_layers),
        out_specs=_vmem_spec(),
    )(idx, emb, *adjs, w_sage, b_sage, edge_feat,
      w_d0s, w_d0d, w_d0e, w_rest, b_dec)


# ----------------------------------------------------------------------------
# Model (parameter setup + glue)
# ----------------------------------------------------------------------------
def init_params(key, vocab_size, gnn_hid, in_feat, mlp_hid, n_layers,
                edge_feat_dim):
    keys = iter(jax.random.split(key, 64))

    def lin(k, fin, fout, scale=None):
        if scale is None:
            scale = 1.0 / np.sqrt(fin)
        w = jax.random.uniform(k, (fin, fout), jnp.float32, -scale, scale)
        b = jax.random.uniform(next(keys), (1, fout), jnp.float32, -scale, scale)
        return w, b

    params = {}
    params["emb"] = jax.random.normal(next(keys), (vocab_size, gnn_hid),
                                      jnp.float32)

    # GraphSAGE layers: in_feat -> gnn_hid -> ... -> gnn_hid
    sage = []
    dims = [in_feat] + [gnn_hid] * (n_layers - 1) + [gnn_hid]
    for li in range(n_layers):
        fin, fout = dims[li], dims[li + 1]
        w_self, _ = lin(next(keys), fin, fout)
        w_neigh, b = lin(next(keys), fin, fout)
        sage.append((w_self, w_neigh, b))
    params["sage"] = sage

    # BatchNorm1d over 2*gnn_hid + edge_feat_dim features (eval: running stats).
    bn_dim = 2 * gnn_hid + edge_feat_dim
    params["bn_gamma"] = jnp.ones((1, bn_dim), jnp.float32)
    params["bn_beta"] = jnp.zeros((1, bn_dim), jnp.float32)
    params["bn_mean"] = jnp.zeros((1, bn_dim), jnp.float32)
    params["bn_var"] = jnp.ones((1, bn_dim), jnp.float32)

    # Decoder: bn_dim -> mlp_hid x5 -> 2
    dec = []
    ddims = [bn_dim] + [mlp_hid] * 5 + [2]
    for li in range(6):
        dec.append(lin(next(keys), ddims[li], ddims[li + 1]))
    params["decoder"] = dec
    return params


@jax.jit
def model_forward(params, x_ids, adjs, pos_src, pos_dst, edge_feat, labels):
    # BatchNorm1d (eval) -> affine scale/shift, folded into decoder layer 0
    # inside fused_forward (exact in eval mode).
    eps = 1e-5
    bn_scale = params["bn_gamma"] / jnp.sqrt(params["bn_var"] + eps)
    bn_shift = params["bn_beta"] - params["bn_mean"] * bn_scale

    h_pos = fused_forward(x_ids, params["emb"], adjs, params["sage"],
                          pos_src, pos_dst, edge_feat,
                          bn_scale, bn_shift, params["decoder"])
    return h_pos, labels.reshape((-1, 1))


# ----------------------------------------------------------------------------
def _pure_jax_ref(params, x_ids, adjs, pos_src, pos_dst, edge_feat):
    h = params["emb"][x_ids]
    for (w_self, w_neigh, b), adj in zip(params["sage"], adjs):
        n_dst = adj.shape[0]
        h = h[:n_dst] @ w_self + (adj @ h) @ w_neigh + b
    aug = jnp.concatenate([h[pos_src], h[pos_dst], edge_feat], axis=1)
    eps = 1e-5
    aug = (aug - params["bn_mean"]) / jnp.sqrt(params["bn_var"] + eps) \
        * params["bn_gamma"] + params["bn_beta"]
    hh = aug
    for i, (w, b) in enumerate(params["decoder"]):
        hh = hh @ w + b
        if i < 5:
            hh = jnp.maximum(hh, 0.0)
    return jax.nn.softmax(hh, axis=1)


if __name__ == "__main__":
    vocab_size, gnn_hid, in_feat, mlp_hid, n_layers = 50, 32, 32, 64, 2
    edge_feat_dim = 75
    N0, N1, N2, E = 24, 16, 8, 8  # src nodes per block / final dst nodes / edges

    key = jax.random.PRNGKey(0)
    k_par, k_x, k_a1, k_a2, k_src, k_dst, k_ef, k_lab = jax.random.split(key, 8)

    params = init_params(k_par, vocab_size, gnn_hid, in_feat, mlp_hid,
                         n_layers, edge_feat_dim)

    # Node ids for the outermost block's src nodes.
    x_ids = jax.random.randint(k_x, (N0,), 0, vocab_size, jnp.int32)

    # Blocks as dense row-normalized adjacencies (mean aggregation).
    def mean_adj(k, n_dst, n_src):
        a = (jax.random.uniform(k, (n_dst, n_src)) < 0.4).astype(jnp.float32)
        deg = jnp.maximum(a.sum(axis=1, keepdims=True), 1.0)
        return a / deg

    adjs = [mean_adj(k_a1, N1, N0), mean_adj(k_a2, N2, N1)]

    # Positive pair graph: E edges among the N2 final dst nodes, with edge data.
    pos_src = jax.random.randint(k_src, (E,), 0, N2, jnp.int32)
    pos_dst = jax.random.randint(k_dst, (E,), 0, N2, jnp.int32)
    edge_feat = jax.random.normal(k_ef, (E, edge_feat_dim), jnp.float32)
    labels = jax.random.randint(k_lab, (E,), 0, 2, jnp.int32).astype(jnp.float32)

    h_pos, labels_out = model_forward(params, x_ids, adjs, pos_src, pos_dst,
                                      edge_feat, labels)
    jax.block_until_ready((h_pos, labels_out))

    assert h_pos.shape == (E, 2)
    assert labels_out.shape == (E, 1)
    assert labels_out.shape[0] == h_pos.shape[0]

    ref = _pure_jax_ref(params, x_ids, adjs, pos_src, pos_dst, edge_feat)
    np.testing.assert_allclose(np.asarray(h_pos), np.asarray(ref),
                               rtol=5e-4, atol=1e-5)

    print("KERNEL_OK")
</pallas_src>

<mosaic_0001>
module attributes {stable_mosaic.version = 11 : i64} {
  func.func @_fused_forward_kernel(%arg0: memref<40x1xi32, #tpu.memory_space<vmem>>, %arg1: memref<50x32xf32, #tpu.memory_space<vmem>>, %arg2: memref<16x24xf32, #tpu.memory_space<vmem>>, %arg3: memref<8x16xf32, #tpu.memory_space<vmem>>, %arg4: memref<2x64x32xf32, #tpu.memory_space<vmem>>, %arg5: memref<2x1x32xf32, #tpu.memory_space<vmem>>, %arg6: memref<8x75xf32, #tpu.memory_space<vmem>>, %arg7: memref<32x64xf32, #tpu.memory_space<vmem>>, %arg8: memref<32x64xf32, #tpu.memory_space<vmem>>, %arg9: memref<75x64xf32, #tpu.memory_space<vmem>>, %arg10: memref<5x64x64xf32, #tpu.memory_space<vmem>>, %arg11: memref<6x1x64xf32, #tpu.memory_space<vmem>>, %arg12: memref<8x2xf32, #tpu.memory_space<vmem>>) attributes {dimension_semantics = [], scalar_prefetch = 0 : i64, scratch_operands = 0 : i64, tpu.core_type = #tpu.core_type<tc>} {
    %c0 = arith.constant 0 : index
    %c0_0 = arith.constant 0 : index
    %0 = vector.load %arg0[%c0, %c0_0] : memref<40x1xi32, #tpu.memory_space<vmem>>, vector<40x1xi32>
    %1 = vector.extract_strided_slice %0 {offsets = [0, 0], sizes = [24, 1], strides = [1, 1]} : vector<40x1xi32> to vector<24x1xi32>
    %2 = vector.extract_strided_slice %0 {offsets = [24, 0], sizes = [8, 1], strides = [1, 1]} : vector<40x1xi32> to vector<8x1xi32>
    %3 = vector.extract_strided_slice %0 {offsets = [32, 0], sizes = [8, 1], strides = [1, 1]} : vector<40x1xi32> to vector<8x1xi32>
    %4 = tpu.iota {dimensions = array<i32: 1>} : vector<24x50xi32>
    %5 = vector.broadcast %1 : vector<24x1xi32> to vector<24x50xi32>
    %6 = arith.cmpi eq, %4, %5 : vector<24x50xi32>
    %7 = arith.extui %6 : vector<24x50xi1> to vector<24x50xi32>
    %8 = arith.sitofp %7 : vector<24x50xi32> to vector<24x50xf32>
    %c0_1 = arith.constant 0 : index
    %c0_2 = arith.constant 0 : index
    %9 = vector.load %arg1[%c0_1, %c0_2] : memref<50x32xf32, #tpu.memory_space<vmem>>, vector<50x32xf32>
    %cst = arith.constant dense<0.000000e+00> : vector<24x32xf32>
    %10 = tpu.matmul %8, %9, %cst {dimension_numbers = #tpu.dot_dimension_numbers<[1], [0], [0], [1], [0, 0, 1, 1], [], []>} : vector<24x50xf32>, vector<50x32xf32>, vector<24x32xf32> -> vector<24x32xf32>
    %c0_3 = arith.constant 0 : index
    %c0_4 = arith.constant 0 : index
    %11 = vector.load %arg2[%c0_3, %c0_4] : memref<16x24xf32, #tpu.memory_space<vmem>>, vector<16x24xf32>
    %cst_5 = arith.constant dense<0.000000e+00> : vector<16x32xf32>
    %12 = tpu.matmul %11, %10, %cst_5 {dimension_numbers = #tpu.dot_dimension_numbers<[1], [0], [0], [1], [0, 0, 1, 1], [], []>} : vector<16x24xf32>, vector<24x32xf32>, vector<16x32xf32> -> vector<16x32xf32>
    %13 = vector.extract_strided_slice %10 {offsets = [0, 0], sizes = [16, 32], strides = [1, 1]} : vector<24x32xf32> to vector<16x32xf32>
    %14 = tpu.concatenate %13, %12 in 1 : vector<16x32xf32>, vector<16x32xf32> -> vector<16x64xf32>
    %c0_6 = arith.constant 0 : index
    %c0_7 = arith.constant 0 : index
    %c0_8 = arith.constant 0 : index
    %15 = vector.load %arg4[%c0_6, %c0_7, %c0_8] : memref<2x64x32xf32, #tpu.memory_space<vmem>>, vector<1x64x32xf32>
    %16 = vector.shape_cast %15 : vector<1x64x32xf32> to vector<64x32xf32>
    %cst_9 = arith.constant dense<0.000000e+00> : vector<16x32xf32>
    %17 = tpu.matmul %14, %16, %cst_9 {dimension_numbers = #tpu.dot_dimension_numbers<[1], [0], [0], [1], [0, 0, 1, 1], [], []>} : vector<16x64xf32>, vector<64x32xf32>, vector<16x32xf32> -> vector<16x32xf32>
    %c0_10 = arith.constant 0 : index
    %c0_11 = arith.constant 0 : index
    %c0_12 = arith.constant 0 : index
    %18 = vector.load %arg5[%c0_10, %c0_11, %c0_12] : memref<2x1x32xf32, #tpu.memory_space<vmem>>, vector<1x1x32xf32>
    %19 = vector.shape_cast %18 : vector<1x1x32xf32> to vector<1x32xf32>
    %20 = vector.broadcast %19 : vector<1x32xf32> to vector<16x32xf32>
    %21 = arith.addf %17, %20 : vector<16x32xf32>
    %c0_13 = arith.constant 0 : index
    %c0_14 = arith.constant 0 : index
    %22 = vector.load %arg3[%c0_13, %c0_14] : memref<8x16xf32, #tpu.memory_space<vmem>>, vector<8x16xf32>
    %cst_15 = arith.constant dense<0.000000e+00> : vector<8x32xf32>
    %23 = tpu.matmul %22, %21, %cst_15 {dimension_numbers = #tpu.dot_dimension_numbers<[1], [0], [0], [1], [0, 0, 1, 1], [], []>} : vector<8x16xf32>, vector<16x32xf32>, vector<8x32xf32> -> vector<8x32xf32>
    %24 = vector.extract_strided_slice %21 {offsets = [0, 0], sizes = [8, 32], strides = [1, 1]} : vector<16x32xf32> to vector<8x32xf32>
    %25 = tpu.concatenate %24, %23 in 1 : vector<8x32xf32>, vector<8x32xf32> -> vector<8x64xf32>
    %c1 = arith.constant 1 : index
    %c0_16 = arith.constant 0 : index
    %c0_17 = arith.constant 0 : index
    %26 = vector.load %arg4[%c1, %c0_16, %c0_17] : memref<2x64x32xf32, #tpu.memory_space<vmem>>, vector<1x64x32xf32>
    %27 = vector.shape_cast %26 : vector<1x64x32xf32> to vector<64x32xf32>
    %cst_18 = arith.constant dense<0.000000e+00> : vector<8x32xf32>
    %28 = tpu.matmul %25, %27, %cst_18 {dimension_numbers = #tpu.dot_dimension_numbers<[1], [0], [0], [1], [0, 0, 1, 1], [], []>} : vector<8x64xf32>, vector<64x32xf32>, vector<8x32xf32> -> vector<8x32xf32>
    %c1_19 = arith.constant 1 : index
    %c0_20 = arith.constant 0 : index
    %c0_21 = arith.constant 0 : index
    %29 = vector.load %arg5[%c1_19, %c0_20, %c0_21] : memref<2x1x32xf32, #tpu.memory_space<vmem>>, vector<1x1x32xf32>
    %30 = vector.shape_cast %29 : vector<1x1x32xf32> to vector<1x32xf32>
    %31 = vector.broadcast %30 : vector<1x32xf32> to vector<8x32xf32>
    %32 = arith.addf %28, %31 : vector<8x32xf32>
    %33 = tpu.iota {dimensions = array<i32: 1>} : vector<8x8xi32>
    %34 = vector.broadcast %2 : vector<8x1xi32> to vector<8x8xi32>
    %35 = arith.cmpi eq, %33, %34 : vector<8x8xi32>
    %36 = arith.extui %35 : vector<8x8xi1> to vector<8x8xi32>
    %37 = arith.sitofp %36 : vector<8x8xi32> to vector<8x8xf32>
    %38 = vector.broadcast %3 : vector<8x1xi32> to vector<8x8xi32>
    %39 = arith.cmpi eq, %33, %38 : vector<8x8xi32>
    %40 = arith.extui %39 : vector<8x8xi1> to vector<8x8xi32>
    %41 = arith.sitofp %40 : vector<8x8xi32> to vector<8x8xf32>
    %cst_22 = arith.constant dense<0.000000e+00> : vector<8x32xf32>
    %42 = tpu.matmul %37, %32, %cst_22 {dimension_numbers = #tpu.dot_dimension_numbers<[1], [0], [0], [1], [0, 0, 1, 1], [], []>} : vector<8x8xf32>, vector<8x32xf32>, vector<8x32xf32> -> vector<8x32xf32>
    %cst_23 = arith.constant dense<0.000000e+00> : vector<8x32xf32>
    %43 = tpu.matmul %41, %32, %cst_23 {dimension_numbers = #tpu.dot_dimension_numbers<[1], [0], [0], [1], [0, 0, 1, 1], [], []>} : vector<8x8xf32>, vector<8x32xf32>, vector<8x32xf32> -> vector<8x32xf32>
    %c0_24 = arith.constant 0 : index
    %c0_25 = arith.constant 0 : index
    %44 = vector.load %arg7[%c0_24, %c0_25] : memref<32x64xf32, #tpu.memory_space<vmem>>, vector<32x64xf32>
    %cst_26 = arith.constant dense<0.000000e+00> : vector<8x64xf32>
    %45 = tpu.matmul %42, %44, %cst_26 {dimension_numbers = #tpu.dot_dimension_numbers<[1], [0], [0], [1], [0, 0, 1, 1], [], []>} : vector<8x32xf32>, vector<32x64xf32>, vector<8x64xf32> -> vector<8x64xf32>
    %c0_27 = arith.constant 0 : index
    %c0_28 = arith.constant 0 : index
    %46 = vector.load %arg8[%c0_27, %c0_28] : memref<32x64xf32, #tpu.memory_space<vmem>>, vector<32x64xf32>
    %cst_29 = arith.constant dense<0.000000e+00> : vector<8x64xf32>
    %47 = tpu.matmul %43, %46, %cst_29 {dimension_numbers = #tpu.dot_dimension_numbers<[1], [0], [0], [1], [0, 0, 1, 1], [], []>} : vector<8x32xf32>, vector<32x64xf32>, vector<8x64xf32> -> vector<8x64xf32>
    %48 = arith.addf %45, %47 : vector<8x64xf32>
    %c0_30 = arith.constant 0 : index
    %c0_31 = arith.constant 0 : index
    %49 = vector.load %arg6[%c0_30, %c0_31] : memref<8x75xf32, #tpu.memory_space<vmem>>, vector<8x75xf32>
    %c0_32 = arith.constant 0 : index
    %c0_33 = arith.constant 0 : index
    %50 = vector.load %arg9[%c0_32, %c0_33] : memref<75x64xf32, #tpu.memory_space<vmem>>, vector<75x64xf32>
    %cst_34 = arith.constant dense<0.000000e+00> : vector<8x64xf32>
    %51 = tpu.matmul %49, %50, %cst_34 {dimension_numbers = #tpu.dot_dimension_numbers<[1], [0], [0], [1], [0, 0, 1, 1], [], []>} : vector<8x75xf32>, vector<75x64xf32>, vector<8x64xf32> -> vector<8x64xf32>
    %52 = arith.addf %48, %51 : vector<8x64xf32>
    %c0_35 = arith.constant 0 : index
    %c0_36 = arith.constant 0 : index
    %c0_37 = arith.constant 0 : index
    %53 = vector.load %arg11[%c0_35, %c0_36, %c0_37] : memref<6x1x64xf32, #tpu.memory_space<vmem>>, vector<1x1x64xf32>
    %54 = vector.shape_cast %53 : vector<1x1x64xf32> to vector<1x64xf32>
    %55 = vector.broadcast %54 : vector<1x64xf32> to vector<8x64xf32>
    %56 = arith.addf %52, %55 : vector<8x64xf32>
    %cst_38 = arith.constant 0.000000e+00 : f32
    %57 = vector.broadcast %cst_38 : f32 to vector<8x64xf32>
    %58 = arith.maximumf %56, %57 : vector<8x64xf32>
    %c0_39 = arith.constant 0 : index
    %c0_40 = arith.constant 0 : index
    %c0_41 = arith.constant 0 : index
    %59 = vector.load %arg10[%c0_39, %c0_40, %c0_41] : memref<5x64x64xf32, #tpu.memory_space<vmem>>, vector<1x64x64xf32>
    %60 = vector.shape_cast %59 : vector<1x64x64xf32> to vector<64x64xf32>
    %cst_42 = arith.constant dense<0.000000e+00> : vector<8x64xf32>
    %61 = tpu.matmul %58, %60, %cst_42 {dimension_numbers = #tpu.dot_dimension_numbers<[1], [0], [0], [1], [0, 0, 1, 1], [], []>} : vector<8x64xf32>, vector<64x64xf32>, vector<8x64xf32> -> vector<8x64xf32>
    %c1_43 = arith.constant 1 : index
    %c0_44 = arith.constant 0 : index
    %c0_45 = arith.constant 0 : index
    %62 = vector.load %arg11[%c1_43, %c0_44, %c0_45] : memref<6x1x64xf32, #tpu.memory_space<vmem>>, vector<1x1x64xf32>
    %63 = vector.shape_cast %62 : vector<1x1x64xf32> to vector<1x64xf32>
    %64 = vector.broadcast %63 : vector<1x64xf32> to vector<8x64xf32>
    %65 = arith.addf %61, %64 : vector<8x64xf32>
    %cst_46 = arith.constant 0.000000e+00 : f32
    %66 = vector.broadcast %cst_46 : f32 to vector<8x64xf32>
    %67 = arith.maximumf %65, %66 : vector<8x64xf32>
    %c1_47 = arith.constant 1 : index
    %c0_48 = arith.constant 0 : index
    %c0_49 = arith.constant 0 : index
    %68 = vector.load %arg10[%c1_47, %c0_48, %c0_49] : memref<5x64x64xf32, #tpu.memory_space<vmem>>, vector<1x64x64xf32>
    %69 = vector.shape_cast %68 : vector<1x64x64xf32> to vector<64x64xf32>
    %cst_50 = arith.constant dense<0.000000e+00> : vector<8x64xf32>
    %70 = tpu.matmul %67, %69, %cst_50 {dimension_numbers = #tpu.dot_dimension_numbers<[1], [0], [0], [1], [0, 0, 1, 1], [], []>} : vector<8x64xf32>, vector<64x64xf32>, vector<8x64xf32> -> vector<8x64xf32>
    %c2 = arith.constant 2 : index
    %c0_51 = arith.constant 0 : index
    %c0_52 = arith.constant 0 : index
    %71 = vector.load %arg11[%c2, %c0_51, %c0_52] : memref<6x1x64xf32, #tpu.memory_space<vmem>>, vector<1x1x64xf32>
    %72 = vector.shape_cast %71 : vector<1x1x64xf32> to vector<1x64xf32>
    %73 = vector.broadcast %72 : vector<1x64xf32> to vector<8x64xf32>
    %74 = arith.addf %70, %73 : vector<8x64xf32>
    %cst_53 = arith.constant 0.000000e+00 : f32
    %75 = vector.broadcast %cst_53 : f32 to vector<8x64xf32>
    %76 = arith.maximumf %74, %75 : vector<8x64xf32>
    %c2_54 = arith.constant 2 : index
    %c0_55 = arith.constant 0 : index
    %c0_56 = arith.constant 0 : index
    %77 = vector.load %arg10[%c2_54, %c0_55, %c0_56] : memref<5x64x64xf32, #tpu.memory_space<vmem>>, vector<1x64x64xf32>
    %78 = vector.shape_cast %77 : vector<1x64x64xf32> to vector<64x64xf32>
    %cst_57 = arith.constant dense<0.000000e+00> : vector<8x64xf32>
    %79 = tpu.matmul %76, %78, %cst_57 {dimension_numbers = #tpu.dot_dimension_numbers<[1], [0], [0], [1], [0, 0, 1, 1], [], []>} : vector<8x64xf32>, vector<64x64xf32>, vector<8x64xf32> -> vector<8x64xf32>
    %c3 = arith.constant 3 : index
    %c0_58 = arith.constant 0 : index
    %c0_59 = arith.constant 0 : index
    %80 = vector.load %arg11[%c3, %c0_58, %c0_59] : memref<6x1x64xf32, #tpu.memory_space<vmem>>, vector<1x1x64xf32>
    %81 = vector.shape_cast %80 : vector<1x1x64xf32> to vector<1x64xf32>
    %82 = vector.broadcast %81 : vector<1x64xf32> to vector<8x64xf32>
    %83 = arith.addf %79, %82 : vector<8x64xf32>
    %cst_60 = arith.constant 0.000000e+00 : f32
    %84 = vector.broadcast %cst_60 : f32 to vector<8x64xf32>
    %85 = arith.maximumf %83, %84 : vector<8x64xf32>
    %c3_61 = arith.constant 3 : index
    %c0_62 = arith.constant 0 : index
    %c0_63 = arith.constant 0 : index
    %86 = vector.load %arg10[%c3_61, %c0_62, %c0_63] : memref<5x64x64xf32, #tpu.memory_space<vmem>>, vector<1x64x64xf32>
    %87 = vector.shape_cast %86 : vector<1x64x64xf32> to vector<64x64xf32>
    %cst_64 = arith.constant dense<0.000000e+00> : vector<8x64xf32>
    %88 = tpu.matmul %85, %87, %cst_64 {dimension_numbers = #tpu.dot_dimension_numbers<[1], [0], [0], [1], [0, 0, 1, 1], [], []>} : vector<8x64xf32>, vector<64x64xf32>, vector<8x64xf32> -> vector<8x64xf32>
    %c4 = arith.constant 4 : index
    %c0_65 = arith.constant 0 : index
    %c0_66 = arith.constant 0 : index
    %89 = vector.load %arg11[%c4, %c0_65, %c0_66] : memref<6x1x64xf32, #tpu.memory_space<vmem>>, vector<1x1x64xf32>
    %90 = vector.shape_cast %89 : vector<1x1x64xf32> to vector<1x64xf32>
    %91 = vector.broadcast %90 : vector<1x64xf32> to vector<8x64xf32>
    %92 = arith.addf %88, %91 : vector<8x64xf32>
    %cst_67 = arith.constant 0.000000e+00 : f32
    %93 = vector.broadcast %cst_67 : f32 to vector<8x64xf32>
    %94 = arith.maximumf %92, %93 : vector<8x64xf32>
    %c4_68 = arith.constant 4 : index
    %c0_69 = arith.constant 0 : index
    %c0_70 = arith.constant 0 : index
    %95 = vector.load %arg10[%c4_68, %c0_69, %c0_70] : memref<5x64x64xf32, #tpu.memory_space<vmem>>, vector<1x64x64xf32>
    %96 = vector.shape_cast %95 : vector<1x64x64xf32> to vector<64x64xf32>
    %cst_71 = arith.constant dense<0.000000e+00> : vector<8x64xf32>
    %97 = tpu.matmul %94, %96, %cst_71 {dimension_numbers = #tpu.dot_dimension_numbers<[1], [0], [0], [1], [0, 0, 1, 1], [], []>} : vector<8x64xf32>, vector<64x64xf32>, vector<8x64xf32> -> vector<8x64xf32>
    %c5 = arith.constant 5 : index
    %c0_72 = arith.constant 0 : index
    %c0_73 = arith.constant 0 : index
    %98 = vector.load %arg11[%c5, %c0_72, %c0_73] : memref<6x1x64xf32, #tpu.memory_space<vmem>>, vector<1x1x64xf32>
    %99 = vector.shape_cast %98 : vector<1x1x64xf32> to vector<1x64xf32>
    %100 = vector.broadcast %99 : vector<1x64xf32> to vector<8x64xf32>
    %101 = arith.addf %97, %100 : vector<8x64xf32>
    %102 = vector.extract_strided_slice %101 {offsets = [0, 0], sizes = [8, 1], strides = [1, 1]} : vector<8x64xf32> to vector<8x1xf32>
    %103 = vector.extract_strided_slice %101 {offsets = [0, 1], sizes = [8, 1], strides = [1, 1]} : vector<8x64xf32> to vector<8x1xf32>
    %104 = arith.subf %102, %103 : vector<8x1xf32>
    %105 = math.exp %104 : vector<8x1xf32>
    %cst_74 = arith.constant 1.000000e+00 : f32
    %106 = vector.broadcast %cst_74 : f32 to vector<8x1xf32>
    %107 = arith.addf %106, %105 : vector<8x1xf32>
    %cst_75 = arith.constant 1.000000e+00 : f32
    %108 = vector.broadcast %cst_75 : f32 to vector<8x1xf32>
    %109 = arith.divf %108, %107 : vector<8x1xf32>
    %cst_76 = arith.constant 1.000000e+00 : f32
    %110 = vector.broadcast %cst_76 : f32 to vector<8x1xf32>
    %111 = arith.subf %110, %109 : vector<8x1xf32>
    %112 = tpu.concatenate %111, %109 in 1 : vector<8x1xf32>, vector<8x1xf32> -> vector<8x2xf32>
    %c0_77 = arith.constant 0 : index
    %c0_78 = arith.constant 0 : index
    %113 = vector.load %arg12[%c0_77, %c0_78] : memref<8x2xf32, #tpu.memory_space<vmem>>, vector<8x2xf32>
    tpu.vector_store %arg12[%c0_77, %c0_78], %112 {strides = array<i32>} : memref<8x2xf32, #tpu.memory_space<vmem>>, vector<8x2xf32>,
    return
  }
}

</mosaic_0001>

<llo_original>
// kernel: model_forward.1
$region0: #{model_forward.1}
  #allocation0 [shape = 'u32[]', space=smem, size = 0x4, offset = 0x4, fixed_abs, tag = 'smem constant byte address 0x4 - core index']
  #allocation1 [shape = 'u32[144,128]{1,0:T(1,128)}', space=vmem, size = 0x12000, scoped, tag = 'internal scratch']
  %s0 = inlined_call_operand.vmem [shape: s32[40,1], index: 0, kind: input, shape index: {}]
  %s1 = inlined_call_operand.vmem [shape: f32[50,32], index: 1, kind: input, shape index: {}]
  %s2 = inlined_call_operand.vmem [shape: f32[16,24], index: 2, kind: input, shape index: {}]
  %s3 = inlined_call_operand.vmem [shape: f32[8,16], index: 3, kind: input, shape index: {}]
  %s4 = inlined_call_operand.vmem [shape: f32[2,64,32], index: 4, kind: input, shape index: {}]
  %s5 = inlined_call_operand.vmem [shape: f32[2,1,32], index: 5, kind: input, shape index: {}]
  %s6 = inlined_call_operand.vmem [shape: f32[8,75], index: 6, kind: input, shape index: {}]
  %s7 = inlined_call_operand.vmem [shape: f32[32,64], index: 7, kind: input, shape index: {}]
  %s8 = inlined_call_operand.vmem [shape: f32[32,64], index: 8, kind: input, shape index: {}]
  %s9 = inlined_call_operand.vmem [shape: f32[75,64], index: 9, kind: input, shape index: {}]
  %s10 = inlined_call_operand.vmem [shape: f32[5,64,64], index: 10, kind: input, shape index: {}]
  %s11 = inlined_call_operand.vmem [shape: f32[6,1,64], index: 11, kind: input, shape index: {}]
  %s12 = inlined_call_operand.vmem [shape: f32[8,2], index: 12, kind: output, shape index: {}]
  %s13 = sld [smem:[#allocation0]]
  $region58: #{model_forward.1} parent=0
    _
  %s15 = ssub.s32 1, %s13
  %s16 = scalar_select 0, %s15, %s13
  // Predicated region
  $region2: #{model_forward.1} parent=0 // pred_check
    _
  $region3: #{model_forward.1} parent=0 // pred_check_branch
    %18 = sbr.rel (0) target = $region5
  $region4: #{model_forward.1} parent=0 // pred_region
    _
  $region5: #{model_forward.1} parent=0 // pred_fallthru
    _
  // Predicated region
  $region6: #{model_forward.1} parent=0 // pred_check
    _
  $region7: #{model_forward.1} parent=0 // pred_check_branch
    %20 = sbr.rel (0) target = $region9
  $region8: #{model_forward.1} parent=0 // pred_region
    _
  $region9: #{model_forward.1} parent=0 // pred_fallthru
    _
  // Predicated region
  $region10: #{model_forward.1} parent=0 // pred_check
    _
  $region11: #{model_forward.1} parent=0 // pred_check_branch
    %22 = sbr.rel (0) target = $region13
  $region12: #{model_forward.1} parent=0 // pred_region
    _
  $region13: #{model_forward.1} parent=0 // pred_fallthru
    _
  // Predicated region
  $region14: #{model_forward.1} parent=0 // pred_check
    _
  $region15: #{model_forward.1} parent=0 // pred_check_branch
    %24 = sbr.rel (0) target = $region17
  $region16: #{model_forward.1} parent=0 // pred_region
    _
  $region17: #{model_forward.1} parent=0 // pred_fallthru
    _
  // Predicated region
  $region18: #{model_forward.1} parent=0 // pred_check
    _
  $region19: #{model_forward.1} parent=0 // pred_check_branch
    %26 = sbr.rel (0) target = $region21
  $region20: #{model_forward.1} parent=0 // pred_region
    _
  $region21: #{model_forward.1} parent=0 // pred_fallthru
    _
  // Predicated region
  $region22: #{model_forward.1} parent=0 // pred_check
    _
  $region23: #{model_forward.1} parent=0 // pred_check_branch
    %28 = sbr.rel (0) target = $region25
  $region24: #{model_forward.1} parent=0 // pred_region
    _
  $region25: #{model_forward.1} parent=0 // pred_fallthru
    _
  // Predicated region
  $region26: #{model_forward.1} parent=0 // pred_check
    _
  $region27: #{model_forward.1} parent=0 // pred_check_branch
    %30 = sbr.rel (0) target = $region29
  $region28: #{model_forward.1} parent=0 // pred_region
    _
  $region29: #{model_forward.1} parent=0 // pred_fallthru
    _
  // Predicated region
  $region30: #{model_forward.1} parent=0 // pred_check
    _
  $region31: #{model_forward.1} parent=0 // pred_check_branch
    %32 = sbr.rel (0) target = $region33
  $region32: #{model_forward.1} parent=0 // pred_region
    _
  $region33: #{model_forward.1} parent=0 // pred_fallthru
    _
  // Predicated region
  $region34: #{model_forward.1} parent=0 // pred_check
    _
  $region35: #{model_forward.1} parent=0 // pred_check_branch
    %34 = sbr.rel (0) target = $region37
  $region36: #{model_forward.1} parent=0 // pred_region
    _
  $region37: #{model_forward.1} parent=0 // pred_fallthru
    _
  // Predicated region
  $region38: #{model_forward.1} parent=0 // pred_check
    _
  $region39: #{model_forward.1} parent=0 // pred_check_branch
    %36 = sbr.rel (0) target = $region41
  $region40: #{model_forward.1} parent=0 // pred_region
    _
  $region41: #{model_forward.1} parent=0 // pred_fallthru
    _
  // Predicated region
  $region42: #{model_forward.1} parent=0 // pred_check
    _
  $region43: #{model_forward.1} parent=0 // pred_check_branch
    %38 = sbr.rel (0) target = $region45
  $region44: #{model_forward.1} parent=0 // pred_region
    _
  $region45: #{model_forward.1} parent=0 // pred_fallthru
    _
  // Predicated region
  $region46: #{model_forward.1} parent=0 // pred_check
    _
  $region47: #{model_forward.1} parent=0 // pred_check_branch
    %40 = sbr.rel (0) target = $region49
  $region48: #{model_forward.1} parent=0 // pred_region
    _
  $region49: #{model_forward.1} parent=0 // pred_fallthru
    _
  %v41 = vld [vmem:[%s0] sm:$0xff]
  %v42 = vld [vmem:[%s0 + $0x8] sm:$0xff]
  %v43 = vld [vmem:[%s0 + $0x10] sm:$0xff]
  %v44 = vld [vmem:[%s0 + $0x18] sm:$0xff]
  %v45 = vld [vmem:[%s0 + $0x20] sm:$0xff]
  %v46 = vlaneseq
  %v47 = vand.u32 %v46, 127
  %48 = vset.pattern.permute.xlu0 0
  %49 = vperm.xlu0 %48, %v41
  %v50 = vpop.permute.xlu0 %49
  %51 = vset.pattern.permute.xlu0 0
  %52 = vperm.xlu0 %51, %v42
  %v53 = vpop.permute.xlu0 %52
  %54 = vset.pattern.permute.xlu0 0
  %55 = vperm.xlu0 %54, %v43
  %v56 = vpop.permute.xlu0 %55
  %vm57 = vcmp.eq.s32.totalorder %v47, %v50
  %vm58 = vcmp.eq.s32.totalorder %v47, %v53
  %vm59 = vcmp.eq.s32.totalorder %v47, %v56
  %v60 = vsel %vm57, 1, 0
  %v61 = vsel %vm58, 1, 0
  %v62 = vsel %vm59, 1, 0
  %v63 = vcvt.s32.f32 %v60
  %v64 = vcvt.s32.f32 %v61
  %v65 = vcvt.s32.f32 %v62
  %v66 = vld [vmem:[%s1] sm:$0xff]
  %v67 = vld [vmem:[%s1 + $0x8] sm:$0xff]
  %v68 = vld [vmem:[%s1 + $0x10] sm:$0xff]
  %v69 = vld [vmem:[%s1 + $0x18] sm:$0xff]
  %v70 = vld [vmem:[%s1 + $0x20] sm:$0xff]
  %v71 = vld [vmem:[%s1 + $0x28] sm:$0xff]
  %v72 = vld [vmem:[%s1 + $0x30] sm:$0x3]
  %vm73 = vcmask 408576
  %v75 = vsel %vm73, %v63, 0
  %v78 = vsel %vm73, %v64, 0
  %v81 = vsel %vm73, %v65, 0
  %vm83 = vcmask 1041408
  %v85 = vsel %vm83, %v72, 0
  %87 = vmatprep.subr.mxu0 0.0
  %88 = vmatpush1.msra.mxu0 %v66
  %89 = vmatprep.subr.mxu0 0.0
  %90 = vmatpush1.msra.mxu0 %v67
  %91 = vmatprep.subr.mxu0 0.0
  %92 = vmatpush1.msra.mxu0 %v68
  %93 = vmatprep.subr.mxu0 0.0
  %94 = vmatpush1.msra.mxu0 %v69
  %95 = vmatprep.subr.mxu0 0.0
  %96 = vmatpush1.msra.mxu0 %v70
  %97 = vmatprep.subr.mxu0 0.0
  %98 = vmatpush1.msra.mxu0 %v71
  %99 = vmatprep.subr.mxu0 0.0
  %100 = vmatpush1.msra.mxu0 %v85
  %101 = vmatprep.subr.mxu0 0.0
  %102 = vmatpush1.msra.mxu0 0.0
  %103 = vmatprep.subr.mxu0 0.0
  %104 = vmatpush1.msra.mxu0 0.0
  %105 = vmatprep.subr.mxu0 0.0
  %106 = vmatpush1.msra.mxu0 0.0
  %107 = vmatprep.subr.mxu0 0.0
  %108 = vmatpush1.msra.mxu0 0.0
  %109 = vmatprep.subr.mxu0 0.0
  %110 = vmatpush1.msra.mxu0 0.0
  %111 = vmatprep.subr.mxu0 0.0
  %112 = vmatpush1.msra.mxu0 0.0
  %113 = vmatprep.subr.mxu0 0.0
  %114 = vmatpush1.msra.mxu0 0.0
  %115 = vmatprep.subr.mxu0 0.0
  %116 = vmatpush1.msra.mxu0 0.0
  %117 = vmatprep.subr.mxu0 0.0
  %118 = vmatpush1.msra.mxu0 0.0
  %119 = vmatprep.subr.mxu0 0.0
  %120 = vmatpush1.msra.mxu0 0.0
  %121 = vmatprep.subr.mxu0 0.0
  %122 = vmatpush1.msra.mxu0 0.0
  %123 = vmatprep.subr.mxu0 0.0
  %124 = vmatpush1.msra.mxu0 0.0
  %125 = vmatprep.subr.mxu0 0.0
  %126 = vmatpush1.msra.mxu0 0.0
  %127 = vmatprep.subr.mxu0 0.0
  %128 = vmatpush1.msra.mxu0 0.0
  %129 = vmatprep.subr.mxu0 0.0
  %130 = vmatpush1.msra.mxu0 0.0
  %131 = vmatprep.subr.mxu0 0.0
  %132 = vmatpush1.msra.mxu0 0.0
  %133 = vmatprep.subr.mxu0 0.0
  %134 = vmatpush1.msra.mxu0 0.0
  %135 = vmatprep.subr.mxu0 0.0
  %136 = vmatpush1.msra.mxu0 0.0
  %137 = vmatprep.subr.mxu0 0.0
  %138 = vmatpush1.msra.mxu0 0.0
  %139 = vmatprep.subr.mxu0 0.0
  %140 = vmatpush1.msra.mxu0 0.0
  %141 = vmatprep.subr.mxu0 0.0
  %142 = vmatpush1.msra.mxu0 0.0
  %143 = vmatprep.subr.mxu0 0.0
  %144 = vmatpush1.msra.mxu0 0.0
  %145 = vmatprep.subr.mxu0 0.0
  %146 = vmatpush1.msra.mxu0 0.0
  %147 = vmatprep.subr.mxu0 0.0
  %148 = vmatpush1.msra.mxu0 0.0
  %149 = vmatprep.subr.mxu0 0.0
  %150 = vmatpush1.msra.mxu0 0.0
  %151 = vmatprep.mubr.f32.mxu0 0.0
  %152 = vmatmul.mubr.f32.gmra.mrb[0].mxu0 %v75
  %v153 = vpop.f32.mrb[0].mxu0
  %v154 = vadd.f32 0.0, %v153
  %v155 = vpop.f32.mrb[0].mxu0
  %156 = vmatprep.mubr.f32.mxu0 0.0
  %157 = vmatmul.mubr.f32.gmra.mrb[0].mxu0 %v78
  %v158 = vpop.f32.mrb[0].mxu0
  %v159 = vadd.f32 0.0, %v158
  %v160 = vpop.f32.mrb[0].mxu0
  %161 = vmatprep.mubr.f32.mxu0 0.0
  %162 = vmatmul.mubr.f32.gmra.mrb[0].mxu0 %v81
  %v163 = vpop.f32.mrb[0].mxu0
  %v164 = vadd.f32 0.0, %v163
  %v165 = vpop.f32.mrb[0].mxu0
  %166 = vdwg.mxu0
  %v167 = vld [vmem:[%s2] sm:$0xff]
  %v168 = vld [vmem:[%s2 + $0x8] sm:$0xff]
  %vm169 = vcmask 195584
  %v171 = vsel %vm169, %v167, 0
  %v174 = vsel %vm169, %v168, 0
  %176 = vmatprep.subr.mxu0 0.0
  %177 = vmatpush1.msra.mxu0 %v154
  %178 = vmatprep.subr.mxu0 0.0
  %179 = vmatpush1.msra.mxu0 %v159
  %180 = vmatprep.subr.mxu0 0.0
  %181 = vmatpush1.msra.mxu0 %v164
  %182 = vmatprep.subr.mxu0 0.0
  %183 = vmatpush1.msra.mxu0 0.0
  %184 = vmatprep.subr.mxu0 0.0
  %185 = vmatpush1.msra.mxu0 0.0
  %186 = vmatprep.subr.mxu0 0.0
  %187 = vmatpush1.msra.mxu0 0.0
  %188 = vmatprep.subr.mxu0 0.0
  %189 = vmatpush1.msra.mxu0 0.0
  %190 = vmatprep.subr.mxu0 0.0
  %191 = vmatpush1.msra.mxu0 0.0
  %192 = vmatprep.subr.mxu0 0.0
  %193 = vmatpush1.msra.mxu0 0.0
  %194 = vmatprep.subr.mxu0 0.0
  %195 = vmatpush1.msra.mxu0 0.0
  %196 = vmatprep.subr.mxu0 0.0
  %197 = vmatpush1.msra.mxu0 0.0
  %198 = vmatprep.subr.mxu0 0.0
  %199 = vmatpush1.msra.mxu0 0.0
  %200 = vmatprep.subr.mxu0 0.0
  %201 = vmatpush1.msra.mxu0 0.0
  %202 = vmatprep.subr.mxu0 0.0
  %203 = vmatpush1.msra.mxu0 0.0
  %204 = vmatprep.subr.mxu0 0.0
  %205 = vmatpush1.msra.mxu0 0.0
  %206 = vmatprep.subr.mxu0 0.0
  %207 = vmatpush1.msra.mxu0 0.0
  %208 = vmatprep.subr.mxu0 0.0
  %209 = vmatpush1.msra.mxu0 0.0
  %210 = vmatprep.subr.mxu0 0.0
  %211 = vmatpush1.msra.mxu0 0.0
  %212 = vmatprep.subr.mxu0 0.0
  %213 = vmatpush1.msra.mxu0 0.0
  %214 = vmatprep.subr.mxu0 0.0
  %215 = vmatpush1.msra.mxu0 0.0
  %216 = vmatprep.subr.mxu0 0.0
  %217 = vmatpush1.msra.mxu0 0.0
  %218 = vmatprep.subr.mxu0 0.0
  %219 = vmatpush1.msra.mxu0 0.0
  %220 = vmatprep.subr.mxu0 0.0
  %221 = vmatpush1.msra.mxu0 0.0
  %222 = vmatprep.subr.mxu0 0.0
  %223 = vmatpush1.msra.mxu0 0.0
  %224 = vmatprep.subr.mxu0 0.0
  %225 = vmatpush1.msra.mxu0 0.0
  %226 = vmatprep.subr.mxu0 0.0
  %227 = vmatpush1.msra.mxu0 0.0
  %228 = vmatprep.subr.mxu0 0.0
  %229 = vmatpush1.msra.mxu0 0.0
  %230 = vmatprep.subr.mxu0 0.0
  %231 = vmatpush1.msra.mxu0 0.0
  %232 = vmatprep.subr.mxu0 0.0
  %233 = vmatpush1.msra.mxu0 0.0
  %234 = vmatprep.subr.mxu0 0.0
  %235 = vmatpush1.msra.mxu0 0.0
  %236 = vmatprep.subr.mxu0 0.0
  %237 = vmatpush1.msra.mxu0 0.0
  %238 = vmatprep.subr.mxu0 0.0
  %239 = vmatpush1.msra.mxu0 0.0
  %240 = vmatprep.mubr.f32.mxu0 0.0
  %241 = vmatmul.mubr.f32.gmra.mrb[0].mxu0 %v171
  %v242 = vpop.f32.mrb[0].mxu0
  %v243 = vadd.f32 0.0, %v242
  %v244 = vpop.f32.mrb[0].mxu0
  %245 = vmatprep.mubr.f32.mxu0 0.0
  %246 = vmatmul.mubr.f32.gmra.mrb[0].mxu0 %v174
  %v247 = vpop.f32.mrb[0].mxu0
  %v248 = vadd.f32 0.0, %v247
  %v249 = vpop.f32.mrb[0].mxu0
  %250 = vdwg.mxu0
  %253 = vrot.lane.b32.xlu0 %v243, 32
  %v254 = vpop.permute.xlu0 %253
  %255 = vrot.lane.b32.xlu0 %v248, 32
  %v256 = vpop.permute.xlu0 %255
  %vm259 = vcmask 261120
  %v260 = vsel %vm259, %v154, %v254
  %v261 = vsel %vm259, %v159, %v256
  %v262 = vld [vmem:[%s4] sm:$0xff]
  %v263 = vld [vmem:[%s4 + $0x8] sm:$0xff]
  %v264 = vld [vmem:[%s4 + $0x10] sm:$0xff]
  %v265 = vld [vmem:[%s4 + $0x18] sm:$0xff]
  %v266 = vld [vmem:[%s4 + $0x20] sm:$0xff]
  %v267 = vld [vmem:[%s4 + $0x28] sm:$0xff]
  %v268 = vld [vmem:[%s4 + $0x30] sm:$0xff]
  %v269 = vld [vmem:[%s4 + $0x38] sm:$0xff]
  %v270 = vld [vmem:[%s5] sm:$0x1]
  %v272 = vlaneseq
  %v273 = vshrl.u32 %v272, 7
  %v274 = vsub.s32 0, %v273
  %v275 = vrot.slane %v270, %v274
  %vm277 = vcmask 523264
  %v279 = vsel %vm277, %v260, 0
  %v282 = vsel %vm277, %v261, 0
  %284 = vmatprep.subr.mxu0 0.0
  %285 = vmatpush1.msra.mxu0 %v262
  %286 = vmatprep.subr.mxu0 0.0
  %287 = vmatpush1.msra.mxu0 %v263
  %288 = vmatprep.subr.mxu0 0.0
  %289 = vmatpush1.msra.mxu0 %v264
  %290 = vmatprep.subr.mxu0 0.0
  %291 = vmatpush1.msra.mxu0 %v265
  %292 = vmatprep.subr.mxu0 0.0
  %293 = vmatpush1.msra.mxu0 %v266
  %294 = vmatprep.subr.mxu0 0.0
  %295 = vmatpush1.msra.mxu0 %v267
  %296 = vmatprep.subr.mxu0 0.0
  %297 = vmatpush1.msra.mxu0 %v268
  %298 = vmatprep.subr.mxu0 0.0
  %299 = vmatpush1.msra.mxu0 %v269
  %300 = vmatprep.subr.mxu0 0.0
  %301 = vmatpush1.msra.mxu0 0.0
  %302 = vmatprep.subr.mxu0 0.0
  %303 = vmatpush1.msra.mxu0 0.0
  %304 = vmatprep.subr.mxu0 0.0
  %305 = vmatpush1.msra.mxu0 0.0
  %306 = vmatprep.subr.mxu0 0.0
  %307 = vmatpush1.msra.mxu0 0.0
  %308 = vmatprep.subr.mxu0 0.0
  %309 = vmatpush1.msra.mxu0 0.0
  %310 = vmatprep.subr.mxu0 0.0
  %311 = vmatpush1.msra.mxu0 0.0
  %312 = vmatprep.subr.mxu0 0.0
  %313 = vmatpush1.msra.mxu0 0.0
  %314 = vmatprep.subr.mxu0 0.0
  %315 = vmatpush1.msra.mxu0 0.0
  %316 = vmatprep.subr.mxu0 0.0
  %317 = vmatpush1.msra.mxu0 0.0
  %318 = vmatprep.subr.mxu0 0.0
  %319 = vmatpush1.msra.mxu0 0.0
  %320 = vmatprep.subr.mxu0 0.0
  %321 = vmatpush1.msra.mxu0 0.0
  %322 = vmatprep.subr.mxu0 0.0
  %323 = vmatpush1.msra.mxu0 0.0
  %324 = vmatprep.subr.mxu0 0.0
  %325 = vmatpush1.msra.mxu0 0.0
  %326 = vmatprep.subr.mxu0 0.0
  %327 = vmatpush1.msra.mxu0 0.0
  %328 = vmatprep.subr.mxu0 0.0
  %329 = vmatpush1.msra.mxu0 0.0
  %330 = vmatprep.subr.mxu0 0.0
  %331 = vmatpush1.msra.mxu0 0.0
  %332 = vmatprep.subr.mxu0 0.0
  %333 = vmatpush1.msra.mxu0 0.0
  %334 = vmatprep.subr.mxu0 0.0
  %335 = vmatpush1.msra.mxu0 0.0
  %336 = vmatprep.subr.mxu0 0.0
  %337 = vmatpush1.msra.mxu0 0.0
  %338 = vmatprep.subr.mxu0 0.0
  %339 = vmatpush1.msra.mxu0 0.0
  %340 = vmatprep.subr.mxu0 0.0
  %341 = vmatpush1.msra.mxu0 0.0
  %342 = vmatprep.subr.mxu0 0.0
  %343 = vmatpush1.msra.mxu0 0.0
  %344 = vmatprep.subr.mxu0 0.0
  %345 = vmatpush1.msra.mxu0 0.0
  %346 = vmatprep.subr.mxu0 0.0
  %347 = vmatpush1.msra.mxu0 0.0
  %348 = vmatprep.mubr.f32.mxu0 0.0
  %349 = vmatmul.mubr.f32.gmra.mrb[0].mxu0 %v279
  %v350 = vpop.f32.mrb[0].mxu0
  %v351 = vadd.f32 %v275, %v350
  %v352 = vpop.f32.mrb[0].mxu0
  %353 = vmatprep.mubr.f32.mxu0 0.0
  %354 = vmatmul.mubr.f32.gmra.mrb[0].mxu0 %v282
  %v355 = vpop.f32.mrb[0].mxu0
  %v356 = vadd.f32 %v275, %v355
  %v357 = vpop.f32.mrb[0].mxu0
  %358 = vdwg.mxu0
  %v359 = vld [vmem:[%s3] sm:$0xff]
  %vm360 = vcmask 130048
  %v362 = vsel %vm360, %v359, 0
  %364 = vmatprep.subr.mxu0 0.0
  %365 = vmatpush1.msra.mxu0 %v351
  %366 = vmatprep.subr.mxu0 0.0
  %367 = vmatpush1.msra.mxu0 %v356
  %368 = vmatprep.subr.mxu0 0.0
  %369 = vmatpush1.msra.mxu0 0.0
  %370 = vmatprep.subr.mxu0 0.0
  %371 = vmatpush1.msra.mxu0 0.0
  %372 = vmatprep.subr.mxu0 0.0
  %373 = vmatpush1.msra.mxu0 0.0
  %374 = vmatprep.subr.mxu0 0.0
  %375 = vmatpush1.msra.mxu0 0.0
  %376 = vmatprep.subr.mxu0 0.0
  %377 = vmatpush1.msra.mxu0 0.0
  %378 = vmatprep.subr.mxu0 0.0
  %379 = vmatpush1.msra.mxu0 0.0
  %380 = vmatprep.subr.mxu0 0.0
  %381 = vmatpush1.msra.mxu0 0.0
  %382 = vmatprep.subr.mxu0 0.0
  %383 = vmatpush1.msra.mxu0 0.0
  %384 = vmatprep.subr.mxu0 0.0
  %385 = vmatpush1.msra.mxu0 0.0
  %386 = vmatprep.subr.mxu0 0.0
  %387 = vmatpush1.msra.mxu0 0.0
  %388 = vmatprep.subr.mxu0 0.0
  %389 = vmatpush1.msra.mxu0 0.0
  %390 = vmatprep.subr.mxu0 0.0
  %391 = vmatpush1.msra.mxu0 0.0
  %392 = vmatprep.subr.mxu0 0.0
  %393 = vmatpush1.msra.mxu0 0.0
  %394 = vmatprep.subr.mxu0 0.0
  %395 = vmatpush1.msra.mxu0 0.0
  %396 = vmatprep.subr.mxu0 0.0
  %397 = vmatpush1.msra.mxu0 0.0
  %398 = vmatprep.subr.mxu0 0.0
  %399 = vmatpush1.msra.mxu0 0.0
  %400 = vmatprep.subr.mxu0 0.0
  %401 = vmatpush1.msra.mxu0 0.0
  %402 = vmatprep.subr.mxu0 0.0
  %403 = vmatpush1.msra.mxu0 0.0
  %404 = vmatprep.subr.mxu0 0.0
  %405 = vmatpush1.msra.mxu0 0.0
  %406 = vmatprep.subr.mxu0 0.0
  %407 = vmatpush1.msra.mxu0 0.0
  %408 = vmatprep.subr.mxu0 0.0
  %409 = vmatpush1.msra.mxu0 0.0
  %410 = vmatprep.subr.mxu0 0.0
  %411 = vmatpush1.msra.mxu0 0.0
  %412 = vmatprep.subr.mxu0 0.0
  %413 = vmatpush1.msra.mxu0 0.0
  %414 = vmatprep.subr.mxu0 0.0
  %415 = vmatpush1.msra.mxu0 0.0
  %416 = vmatprep.subr.mxu0 0.0
  %417 = vmatpush1.msra.mxu0 0.0
  %418 = vmatprep.subr.mxu0 0.0
  %419 = vmatpush1.msra.mxu0 0.0
  %420 = vmatprep.subr.mxu0 0.0
  %421 = vmatpush1.msra.mxu0 0.0
  %422 = vmatprep.subr.mxu0 0.0
  %423 = vmatpush1.msra.mxu0 0.0
  %424 = vmatprep.subr.mxu0 0.0
  %425 = vmatpush1.msra.mxu0 0.0
  %426 = vmatprep.subr.mxu0 0.0
  %427 = vmatpush1.msra.mxu0 0.0
  %428 = vmatprep.mubr.f32.mxu0 0.0
  %429 = vmatmul.mubr.f32.gmra.mrb[0].mxu0 %v362
  %v430 = vpop.f32.mrb[0].mxu0
  %v431 = vadd.f32 0.0, %v430
  %v432 = vpop.f32.mrb[0].mxu0
  %433 = vdwg.mxu0
  %435 = vrot.lane.b32.xlu0 %v431, 32
  %v436 = vpop.permute.xlu0 %435
  %v438 = vsel %vm259, %v351, %v436
  %s439 = scalar_lea.vmem %s4, 64
  %v440 = vld [vmem:[%s439] sm:$0xff]
  %v441 = vld [vmem:[%s439 + $0x8] sm:$0xff]
  %v442 = vld [vmem:[%s439 + $0x10] sm:$0xff]
  %v443 = vld [vmem:[%s439 + $0x18] sm:$0xff]
  %v444 = vld [vmem:[%s439 + $0x20] sm:$0xff]
  %v445 = vld [vmem:[%s439 + $0x28] sm:$0xff]
  %v446 = vld [vmem:[%s439 + $0x30] sm:$0xff]
  %v447 = vld [vmem:[%s439 + $0x38] sm:$0xff]
  %s448 = scalar_lea.vmem %s5, 1
  %v449 = vld [vmem:[%s448] sm:$0x1]
  %v451 = vlaneseq
  %v452 = vshrl.u32 %v451, 7
  %v453 = vsub.s32 0, %v452
  %v454 = vrot.slane %v449, %v453
  %v457 = vsel %vm277, %v438, 0
  %459 = vmatprep.subr.mxu0 0.0
  %460 = vmatpush1.msra.mxu0 %v440
  %461 = vmatprep.subr.mxu0 0.0
  %462 = vmatpush1.msra.mxu0 %v441
  %463 = vmatprep.subr.mxu0 0.0
  %464 = vmatpush1.msra.mxu0 %v442
  %465 = vmatprep.subr.mxu0 0.0
  %466 = vmatpush1.msra.mxu0 %v443
  %467 = vmatprep.subr.mxu0 0.0
  %468 = vmatpush1.msra.mxu0 %v444
  %469 = vmatprep.subr.mxu0 0.0
  %470 = vmatpush1.msra.mxu0 %v445
  %471 = vmatprep.subr.mxu0 0.0
  %472 = vmatpush1.msra.mxu0 %v446
  %473 = vmatprep.subr.mxu0 0.0
  %474 = vmatpush1.msra.mxu0 %v447
  %475 = vmatprep.subr.mxu0 0.0
  %476 = vmatpush1.msra.mxu0 0.0
  %477 = vmatprep.subr.mxu0 0.0
  %478 = vmatpush1.msra.mxu0 0.0
  %479 = vmatprep.subr.mxu0 0.0
  %480 = vmatpush1.msra.mxu0 0.0
  %481 = vmatprep.subr.mxu0 0.0
  %482 = vmatpush1.msra.mxu0 0.0
  %483 = vmatprep.subr.mxu0 0.0
  %484 = vmatpush1.msra.mxu0 0.0
  %485 = vmatprep.subr.mxu0 0.0
  %486 = vmatpush1.msra.mxu0 0.0
  %487 = vmatprep.subr.mxu0 0.0
  %488 = vmatpush1.msra.mxu0 0.0
  %489 = vmatprep.subr.mxu0 0.0
  %490 = vmatpush1.msra.mxu0 0.0
  %491 = vmatprep.subr.mxu0 0.0
  %492 = vmatpush1.msra.mxu0 0.0
  %493 = vmatprep.subr.mxu0 0.0
  %494 = vmatpush1.msra.mxu0 0.0
  %495 = vmatprep.subr.mxu0 0.0
  %496 = vmatpush1.msra.mxu0 0.0
  %497 = vmatprep.subr.mxu0 0.0
  %498 = vmatpush1.msra.mxu0 0.0
  %499 = vmatprep.subr.mxu0 0.0
  %500 = vmatpush1.msra.mxu0 0.0
  %501 = vmatprep.subr.mxu0 0.0
  %502 = vmatpush1.msra.mxu0 0.0
  %503 = vmatprep.subr.mxu0 0.0
  %504 = vmatpush1.msra.mxu0 0.0
  %505 = vmatprep.subr.mxu0 0.0
  %506 = vmatpush1.msra.mxu0 0.0
  %507 = vmatprep.subr.mxu0 0.0
  %508 = vmatpush1.msra.mxu0 0.0
  %509 = vmatprep.subr.mxu0 0.0
  %510 = vmatpush1.msra.mxu0 0.0
  %511 = vmatprep.subr.mxu0 0.0
  %512 = vmatpush1.msra.mxu0 0.0
  %513 = vmatprep.subr.mxu0 0.0
  %514 = vmatpush1.msra.mxu0 0.0
  %515 = vmatprep.subr.mxu0 0.0
  %516 = vmatpush1.msra.mxu0 0.0
  %517 = vmatprep.subr.mxu0 0.0
  %518 = vmatpush1.msra.mxu0 0.0
  %519 = vmatprep.subr.mxu0 0.0
  %520 = vmatpush1.msra.mxu0 0.0
  %521 = vmatprep.subr.mxu0 0.0
  %522 = vmatpush1.msra.mxu0 0.0
  %523 = vmatprep.mubr.f32.mxu0 0.0
  %524 = vmatmul.mubr.f32.gmra.mrb[0].mxu0 %v457
  %v525 = vpop.f32.mrb[0].mxu0
  %v526 = vadd.f32 %v454, %v525
  %v527 = vpop.f32.mrb[0].mxu0
  %528 = vdwg.mxu0
  %529 = vset.pattern.permute.xlu0 0
  %530 = vperm.xlu0 %529, %v44
  %v531 = vpop.permute.xlu0 %530
  %vm532 = vcmp.eq.s32.totalorder %v47, %v531
  %v533 = vsel %vm532, 1, 0
  %v534 = vcvt.s32.f32 %v533
  %535 = vset.pattern.permute.xlu0 0
  %536 = vperm.xlu0 %535, %v45
  %v537 = vpop.permute.xlu0 %536
  %vm538 = vcmp.eq.s32.totalorder %v47, %v537
  %v539 = vsel %vm538, 1, 0
  %v540 = vcvt.s32.f32 %v539
  %vm541 = vcmask 64512
  %v543 = vsel %vm541, %v534, 0
  %545 = vmatprep.subr.mxu0 0.0
  %546 = vmatpush1.msra.mxu0 %v526
  %547 = vmatprep.subr.mxu0 0.0
  %548 = vmatpush1.msra.mxu0 0.0
  %549 = vmatprep.subr.mxu0 0.0
  %550 = vmatpush1.msra.mxu0 0.0
  %551 = vmatprep.subr.mxu0 0.0
  %552 = vmatpush1.msra.mxu0 0.0
  %553 = vmatprep.subr.mxu0 0.0
  %554 = vmatpush1.msra.mxu0 0.0
  %555 = vmatprep.subr.mxu0 0.0
  %556 = vmatpush1.msra.mxu0 0.0
  %557 = vmatprep.subr.mxu0 0.0
  %558 = vmatpush1.msra.mxu0 0.0
  %559 = vmatprep.subr.mxu0 0.0
  %560 = vmatpush1.msra.mxu0 0.0
  %561 = vmatprep.subr.mxu0 0.0
  %562 = vmatpush1.msra.mxu0 0.0
  %563 = vmatprep.subr.mxu0 0.0
  %564 = vmatpush1.msra.mxu0 0.0
  %565 = vmatprep.subr.mxu0 0.0
  %566 = vmatpush1.msra.mxu0 0.0
  %567 = vmatprep.subr.mxu0 0.0
  %568 = vmatpush1.msra.mxu0 0.0
  %569 = vmatprep.subr.mxu0 0.0
  %570 = vmatpush1.msra.mxu0 0.0
  %571 = vmatprep.subr.mxu0 0.0
  %572 = vmatpush1.msra.mxu0 0.0
  %573 = vmatprep.subr.mxu0 0.0
  %574 = vmatpush1.msra.mxu0 0.0
  %575 = vmatprep.subr.mxu0 0.0
  %576 = vmatpush1.msra.mxu0 0.0
  %577 = vmatprep.subr.mxu0 0.0
  %578 = vmatpush1.msra.mxu0 0.0
  %579 = vmatprep.subr.mxu0 0.0
  %580 = vmatpush1.msra.mxu0 0.0
  %581 = vmatprep.subr.mxu0 0.0
  %582 = vmatpush1.msra.mxu0 0.0
  %583 = vmatprep.subr.mxu0 0.0
  %584 = vmatpush1.msra.mxu0 0.0
  %585 = vmatprep.subr.mxu0 0.0
  %586 = vmatpush1.msra.mxu0 0.0
  %587 = vmatprep.subr.mxu0 0.0
  %588 = vmatpush1.msra.mxu0 0.0
  %589 = vmatprep.subr.mxu0 0.0
  %590 = vmatpush1.msra.mxu0 0.0
  %591 = vmatprep.subr.mxu0 0.0
  %592 = vmatpush1.msra.mxu0 0.0
  %593 = vmatprep.subr.mxu0 0.0
  %594 = vmatpush1.msra.mxu0 0.0
  %595 = vmatprep.subr.mxu0 0.0
  %596 = vmatpush1.msra.mxu0 0.0
  %597 = vmatprep.subr.mxu0 0.0
  %598 = vmatpush1.msra.mxu0 0.0
  %599 = vmatprep.subr.mxu0 0.0
  %600 = vmatpush1.msra.mxu0 0.0
  %601 = vmatprep.subr.mxu0 0.0
  %602 = vmatpush1.msra.mxu0 0.0
  %603 = vmatprep.subr.mxu0 0.0
  %604 = vmatpush1.msra.mxu0 0.0
  %605 = vmatprep.subr.mxu0 0.0
  %606 = vmatpush1.msra.mxu0 0.0
  %607 = vmatprep.subr.mxu0 0.0
  %608 = vmatpush1.msra.mxu0 0.0
  %609 = vmatprep.mubr.f32.mxu0 0.0
  %610 = vmatmul.mubr.f32.gmra.mrb[0].mxu0 %v543
  %v611 = vpop.f32.mrb[0].mxu0
  %v612 = vadd.f32 0.0, %v611
  %v613 = vpop.f32.mrb[0].mxu0
  %614 = vdwg.mxu0
  %v616 = vsel %vm541, %v540, 0
  %618 = vmatprep.subr.mxu0 0.0
  %619 = vmatpush1.msra.mxu0 %v526
  %620 = vmatprep.subr.mxu0 0.0
  %621 = vmatpush1.msra.mxu0 0.0
  %622 = vmatprep.subr.mxu0 0.0
  %623 = vmatpush1.msra.mxu0 0.0
  %624 = vmatprep.subr.mxu0 0.0
  %625 = vmatpush1.msra.mxu0 0.0
  %626 = vmatprep.subr.mxu0 0.0
  %627 = vmatpush1.msra.mxu0 0.0
  %628 = vmatprep.subr.mxu0 0.0
  %629 = vmatpush1.msra.mxu0 0.0
  %630 = vmatprep.subr.mxu0 0.0
  %631 = vmatpush1.msra.mxu0 0.0
  %632 = vmatprep.subr.mxu0 0.0
  %633 = vmatpush1.msra.mxu0 0.0
  %634 = vmatprep.subr.mxu0 0.0
  %635 = vmatpush1.msra.mxu0 0.0
  %636 = vmatprep.subr.mxu0 0.0
  %637 = vmatpush1.msra.mxu0 0.0
  %638 = vmatprep.subr.mxu0 0.0
  %639 = vmatpush1.msra.mxu0 0.0
  %640 = vmatprep.subr.mxu0 0.0
  %641 = vmatpush1.msra.mxu0 0.0
  %642 = vmatprep.subr.mxu0 0.0
  %643 = vmatpush1.msra.mxu0 0.0
  %644 = vmatprep.subr.mxu0 0.0
  %645 = vmatpush1.msra.mxu0 0.0
  %646 = vmatprep.subr.mxu0 0.0
  %647 = vmatpush1.msra.mxu0 0.0
  %648 = vmatprep.subr.mxu0 0.0
  %649 = vmatpush1.msra.mxu0 0.0
  %650 = vmatprep.subr.mxu0 0.0
  %651 = vmatpush1.msra.mxu0 0.0
  %652 = vmatprep.subr.mxu0 0.0
  %653 = vmatpush1.msra.mxu0 0.0
  %654 = vmatprep.subr.mxu0 0.0
  %655 = vmatpush1.msra.mxu0 0.0
  %656 = vmatprep.subr.mxu0 0.0
  %657 = vmatpush1.msra.mxu0 0.0
  %658 = vmatprep.subr.mxu0 0.0
  %659 = vmatpush1.msra.mxu0 0.0
  %660 = vmatprep.subr.mxu0 0.0
  %661 = vmatpush1.msra.mxu0 0.0
  %662 = vmatprep.subr.mxu0 0.0
  %663 = vmatpush1.msra.mxu0 0.0
  %664 = vmatprep.subr.mxu0 0.0
  %665 = vmatpush1.msra.mxu0 0.0
  %666 = vmatprep.subr.mxu0 0.0
  %667 = vmatpush1.msra.mxu0 0.0
  %668 = vmatprep.subr.mxu0 0.0
  %669 = vmatpush1.msra.mxu0 0.0
  %670 = vmatprep.subr.mxu0 0.0
  %671 = vmatpush1.msra.mxu0 0.0
  %672 = vmatprep.subr.mxu0 0.0
  %673 = vmatpush1.msra.mxu0 0.0
  %674 = vmatprep.subr.mxu0 0.0
  %675 = vmatpush1.msra.mxu0 0.0
  %676 = vmatprep.subr.mxu0 0.0
  %677 = vmatpush1.msra.mxu0 0.0
  %678 = vmatprep.subr.mxu0 0.0
  %679 = vmatpush1.msra.mxu0 0.0
  %680 = vmatprep.subr.mxu0 0.0
  %681 = vmatpush1.msra.mxu0 0.0
  %682 = vmatprep.mubr.f32.mxu0 0.0
  %683 = vmatmul.mubr.f32.gmra.mrb[0].mxu0 %v616
  %v684 = vpop.f32.mrb[0].mxu0
  %v685 = vadd.f32 0.0, %v684
  %v686 = vpop.f32.mrb[0].mxu0
  %687 = vdwg.mxu0
  %v688 = vld [vmem:[%s7] sm:$0xff]
  %v689 = vld [vmem:[%s7 + $0x8] sm:$0xff]
  %v690 = vld [vmem:[%s7 + $0x10] sm:$0xff]
  %v691 = vld [vmem:[%s7 + $0x18] sm:$0xff]
  %v692 = vld [vmem:[%s8] sm:$0xff]
  %v693 = vld [vmem:[%s8 + $0x8] sm:$0xff]
  %v694 = vld [vmem:[%s8 + $0x10] sm:$0xff]
  %v695 = vld [vmem:[%s8 + $0x18] sm:$0xff]
  %v697 = vsel %vm259, %v685, 0
  %699 = vmatprep.subr.mxu0 0.0
  %700 = vmatpush1.msra.mxu0 %v692
  %701 = vmatprep.subr.mxu0 0.0
  %702 = vmatpush1.msra.mxu0 %v693
  %703 = vmatprep.subr.mxu0 0.0
  %704 = vmatpush1.msra.mxu0 %v694
  %705 = vmatprep.subr.mxu0 0.0
  %706 = vmatpush1.msra.mxu0 %v695
  %707 = vmatprep.subr.mxu0 0.0
  %708 = vmatpush1.msra.mxu0 0.0
  %709 = vmatprep.subr.mxu0 0.0
  %710 = vmatpush1.msra.mxu0 0.0
  %711 = vmatprep.subr.mxu0 0.0
  %712 = vmatpush1.msra.mxu0 0.0
  %713 = vmatprep.subr.mxu0 0.0
  %714 = vmatpush1.msra.mxu0 0.0
  %715 = vmatprep.subr.mxu0 0.0
  %716 = vmatpush1.msra.mxu0 0.0
  %717 = vmatprep.subr.mxu0 0.0
  %718 = vmatpush1.msra.mxu0 0.0
  %719 = vmatprep.subr.mxu0 0.0
  %720 = vmatpush1.msra.mxu0 0.0
  %721 = vmatprep.subr.mxu0 0.0
  %722 = vmatpush1.msra.mxu0 0.0
  %723 = vmatprep.subr.mxu0 0.0
  %724 = vmatpush1.msra.mxu0 0.0
  %725 = vmatprep.subr.mxu0 0.0
  %726 = vmatpush1.msra.mxu0 0.0
  %727 = vmatprep.subr.mxu0 0.0
  %728 = vmatpush1.msra.mxu0 0.0
  %729 = vmatprep.subr.mxu0 0.0
  %730 = vmatpush1.msra.mxu0 0.0
  %731 = vmatprep.subr.mxu0 0.0
  %732 = vmatpush1.msra.mxu0 0.0
  %733 = vmatprep.subr.mxu0 0.0
  %734 = vmatpush1.msra.mxu0 0.0
  %735 = vmatprep.subr.mxu0 0.0
  %736 = vmatpush1.msra.mxu0 0.0
  %737 = vmatprep.subr.mxu0 0.0
  %738 = vmatpush1.msra.mxu0 0.0
  %739 = vmatprep.subr.mxu0 0.0
  %740 = vmatpush1.msra.mxu0 0.0
  %741 = vmatprep.subr.mxu0 0.0
  %742 = vmatpush1.msra.mxu0 0.0
  %743 = vmatprep.subr.mxu0 0.0
  %744 = vmatpush1.msra.mxu0 0.0
  %745 = vmatprep.subr.mxu0 0.0
  %746 = vmatpush1.msra.mxu0 0.0
  %747 = vmatprep.subr.mxu0 0.0
  %748 = vmatpush1.msra.mxu0 0.0
  %749 = vmatprep.subr.mxu0 0.0
  %750 = vmatpush1.msra.mxu0 0.0
  %751 = vmatprep.subr.mxu0 0.0
  %752 = vmatpush1.msra.mxu0 0.0
  %753 = vmatprep.subr.mxu0 0.0
  %754 = vmatpush1.msra.mxu0 0.0
  %755 = vmatprep.subr.mxu0 0.0
  %756 = vmatpush1.msra.mxu0 0.0
  %757 = vmatprep.subr.mxu0 0.0
  %758 = vmatpush1.msra.mxu0 0.0
  %759 = vmatprep.subr.mxu0 0.0
  %760 = vmatpush1.msra.mxu0 0.0
  %761 = vmatprep.subr.mxu0 0.0
  %762 = vmatpush1.msra.mxu0 0.0
  %763 = vmatprep.mubr.f32.mxu0 0.0
  %764 = vmatmul.mubr.f32.gmra.mrb[0].mxu0 %v697
  %v765 = vpop.f32.mrb[0].mxu0
  %v766 = vadd.f32 0.0, %v765
  %v767 = vpop.f32.mrb[0].mxu0
  %768 = vdwg.mxu0
  %v770 = vsel %vm259, %v612, 0
  %772 = vmatprep.subr.mxu0 0.0
  %773 = vmatpush1.msra.mxu0 %v688
  %774 = vmatprep.subr.mxu0 0.0
  %775 = vmatpush1.msra.mxu0 %v689
  %776 = vmatprep.subr.mxu0 0.0
  %777 = vmatpush1.msra.mxu0 %v690
  %778 = vmatprep.subr.mxu0 0.0
  %779 = vmatpush1.msra.mxu0 %v691
  %780 = vmatprep.subr.mxu0 0.0
  %781 = vmatpush1.msra.mxu0 0.0
  %782 = vmatprep.subr.mxu0 0.0
  %783 = vmatpush1.msra.mxu0 0.0
  %784 = vmatprep.subr.mxu0 0.0
  %785 = vmatpush1.msra.mxu0 0.0
  %786 = vmatprep.subr.mxu0 0.0
  %787 = vmatpush1.msra.mxu0 0.0
  %788 = vmatprep.subr.mxu0 0.0
  %789 = vmatpush1.msra.mxu0 0.0
  %790 = vmatprep.subr.mxu0 0.0
  %791 = vmatpush1.msra.mxu0 0.0
  %792 = vmatprep.subr.mxu0 0.0
  %793 = vmatpush1.msra.mxu0 0.0
  %794 = vmatprep.subr.mxu0 0.0
  %795 = vmatpush1.msra.mxu0 0.0
  %796 = vmatprep.subr.mxu0 0.0
  %797 = vmatpush1.msra.mxu0 0.0
  %798 = vmatprep.subr.mxu0 0.0
  %799 = vmatpush1.msra.mxu0 0.0
  %800 = vmatprep.subr.mxu0 0.0
  %801 = vmatpush1.msra.mxu0 0.0
  %802 = vmatprep.subr.mxu0 0.0
  %803 = vmatpush1.msra.mxu0 0.0
  %804 = vmatprep.subr.mxu0 0.0
  %805 = vmatpush1.msra.mxu0 0.0
  %806 = vmatprep.subr.mxu0 0.0
  %807 = vmatpush1.msra.mxu0 0.0
  %808 = vmatprep.subr.mxu0 0.0
  %809 = vmatpush1.msra.mxu0 0.0
  %810 = vmatprep.subr.mxu0 0.0
  %811 = vmatpush1.msra.mxu0 0.0
  %812 = vmatprep.subr.mxu0 0.0
  %813 = vmatpush1.msra.mxu0 0.0
  %814 = vmatprep.subr.mxu0 0.0
  %815 = vmatpush1.msra.mxu0 0.0
  %816 = vmatprep.subr.mxu0 0.0
  %817 = vmatpush1.msra.mxu0 0.0
  %818 = vmatprep.subr.mxu0 0.0
  %819 = vmatpush1.msra.mxu0 0.0
  %820 = vmatprep.subr.mxu0 0.0
  %821 = vmatpush1.msra.mxu0 0.0
  %822 = vmatprep.subr.mxu0 0.0
  %823 = vmatpush1.msra.mxu0 0.0
  %824 = vmatprep.subr.mxu0 0.0
  %825 = vmatpush1.msra.mxu0 0.0
  %826 = vmatprep.subr.mxu0 0.0
  %827 = vmatpush1.msra.mxu0 0.0
  %828 = vmatprep.subr.mxu0 0.0
  %829 = vmatpush1.msra.mxu0 0.0
  %830 = vmatprep.subr.mxu0 0.0
  %831 = vmatpush1.msra.mxu0 0.0
  %832 = vmatprep.subr.mxu0 0.0
  %833 = vmatpush1.msra.mxu0 0.0
  %834 = vmatprep.subr.mxu0 0.0
  %835 = vmatpush1.msra.mxu0 0.0
  %836 = vmatprep.mubr.f32.mxu0 0.0
  %837 = vmatmul.mubr.f32.gmra.mrb[0].mxu0 %v770
  %v838 = vpop.f32.mrb[0].mxu0
  %v839 = vadd.f32 %v766, %v838
  %v840 = vpop.f32.mrb[0].mxu0
  %841 = vdwg.mxu0
  %v842 = vld [vmem:[%s6] sm:$0xff]
  %v843 = vld [vmem:[%s9] sm:$0xff]
  %v844 = vld [vmem:[%s9 + $0x8] sm:$0xff]
  %v845 = vld [vmem:[%s9 + $0x10] sm:$0xff]
  %v846 = vld [vmem:[%s9 + $0x18] sm:$0xff]
  %v847 = vld [vmem:[%s9 + $0x20] sm:$0xff]
  %v848 = vld [vmem:[%s9 + $0x28] sm:$0xff]
  %v849 = vld [vmem:[%s9 + $0x30] sm:$0xff]
  %v850 = vld [vmem:[%s9 + $0x38] sm:$0xff]
  %v851 = vld [vmem:[%s9 + $0x40] sm:$0xff]
  %v852 = vld [vmem:[%s9 + $0x48] sm:$0x7]
  %vm853 = vcmask 613376
  %v855 = vsel %vm853, %v842, 0
  %vm857 = vcmask 1042432
  %v859 = vsel %vm857, %v852, 0
  %861 = vmatprep.subr.mxu0 0.0
  %862 = vmatpush1.msra.mxu0 %v843
  %863 = vmatprep.subr.mxu0 0.0
  %864 = vmatpush1.msra.mxu0 %v844
  %865 = vmatprep.subr.mxu0 0.0
  %866 = vmatpush1.msra.mxu0 %v845
  %867 = vmatprep.subr.mxu0 0.0
  %868 = vmatpush1.msra.mxu0 %v846
  %869 = vmatprep.subr.mxu0 0.0
  %870 = vmatpush1.msra.mxu0 %v847
  %871 = vmatprep.subr.mxu0 0.0
  %872 = vmatpush1.msra.mxu0 %v848
  %873 = vmatprep.subr.mxu0 0.0
  %874 = vmatpush1.msra.mxu0 %v849
  %875 = vmatprep.subr.mxu0 0.0
  %876 = vmatpush1.msra.mxu0 %v850
  %877 = vmatprep.subr.mxu0 0.0
  %878 = vmatpush1.msra.mxu0 %v851
  %879 = vmatprep.subr.mxu0 0.0
  %880 = vmatpush1.msra.mxu0 %v859
  %881 = vmatprep.subr.mxu0 0.0
  %882 = vmatpush1.msra.mxu0 0.0
  %883 = vmatprep.subr.mxu0 0.0
  %884 = vmatpush1.msra.mxu0 0.0
  %885 = vmatprep.subr.mxu0 0.0
  %886 = vmatpush1.msra.mxu0 0.0
  %887 = vmatprep.subr.mxu0 0.0
  %888 = vmatpush1.msra.mxu0 0.0
  %889 = vmatprep.subr.mxu0 0.0
  %890 = vmatpush1.msra.mxu0 0.0
  %891 = vmatprep.subr.mxu0 0.0
  %892 = vmatpush1.msra.mxu0 0.0
  %893 = vmatprep.subr.mxu0 0.0
  %894 = vmatpush1.msra.mxu0 0.0
  %895 = vmatprep.subr.mxu0 0.0
  %896 = vmatpush1.msra.mxu0 0.0
  %897 = vmatprep.subr.mxu0 0.0
  %898 = vmatpush1.msra.mxu0 0.0
  %899 = vmatprep.subr.mxu0 0.0
  %900 = vmatpush1.msra.mxu0 0.0
  %901 = vmatprep.subr.mxu0 0.0
  %902 = vmatpush1.msra.mxu0 0.0
  %903 = vmatprep.subr.mxu0 0.0
  %904 = vmatpush1.msra.mxu0 0.0
  %905 = vmatprep.subr.mxu0 0.0
  %906 = vmatpush1.msra.mxu0 0.0
  %907 = vmatprep.subr.mxu0 0.0
  %908 = vmatpush1.msra.mxu0 0.0
  %909 = vmatprep.subr.mxu0 0.0
  %910 = vmatpush1.msra.mxu0 0.0
  %911 = vmatprep.subr.mxu0 0.0
  %912 = vmatpush1.msra.mxu0 0.0
  %913 = vmatprep.subr.mxu0 0.0
  %914 = vmatpush1.msra.mxu0 0.0
  %915 = vmatprep.subr.mxu0 0.0
  %916 = vmatpush1.msra.mxu0 0.0
  %917 = vmatprep.subr.mxu0 0.0
  %918 = vmatpush1.msra.mxu0 0.0
  %919 = vmatprep.subr.mxu0 0.0
  %920 = vmatpush1.msra.mxu0 0.0
  %921 = vmatprep.subr.mxu0 0.0
  %922 = vmatpush1.msra.mxu0 0.0
  %923 = vmatprep.subr.mxu0 0.0
  %924 = vmatpush1.msra.mxu0 0.0
  %925 = vmatprep.mubr.f32.mxu0 0.0
  %926 = vmatmul.mubr.f32.gmra.mrb[0].mxu0 %v855
  %v927 = vpop.f32.mrb[0].mxu0
  %v928 = vadd.f32 0.0, %v927
  %v929 = vpop.f32.mrb[0].mxu0
  %930 = vdwg.mxu0
  %v931 = vadd.f32 %v839, %v928
  %v932 = vld [vmem:[%s11] sm:$0x1]
  %v934 = vlaneseq
  %v935 = vshrl.u32 %v934, 7
  %v936 = vsub.s32 0, %v935
  %v937 = vrot.slane %v932, %v936
  %v939 = vadd.f32 %v931, %v937
  %v940 = vmax.f32 %v939, 0.0
  %v941 = vld [vmem:[%s10] sm:$0xff]
  %v942 = vld [vmem:[%s10 + $0x8] sm:$0xff]
  %v943 = vld [vmem:[%s10 + $0x10] sm:$0xff]
  %v944 = vld [vmem:[%s10 + $0x18] sm:$0xff]
  %v945 = vld [vmem:[%s10 + $0x20] sm:$0xff]
  %v946 = vld [vmem:[%s10 + $0x28] sm:$0xff]
  %v947 = vld [vmem:[%s10 + $0x30] sm:$0xff]
  %v948 = vld [vmem:[%s10 + $0x38] sm:$0xff]
  %s949 = scalar_lea.vmem %s11, 1
  %v950 = vld [vmem:[%s949] sm:$0x1]
  %v952 = vlaneseq
  %v953 = vshrl.u32 %v952, 7
  %v954 = vsub.s32 0, %v953
  %v955 = vrot.slane %v950, %v954
  %v958 = vsel %vm277, %v940, 0
  %960 = vmatprep.subr.mxu0 0.0
  %961 = vmatpush1.msra.mxu0 %v941
  %962 = vmatprep.subr.mxu0 0.0
  %963 = vmatpush1.msra.mxu0 %v942
  %964 = vmatprep.subr.mxu0 0.0
  %965 = vmatpush1.msra.mxu0 %v943
  %966 = vmatprep.subr.mxu0 0.0
  %967 = vmatpush1.msra.mxu0 %v944
  %968 = vmatprep.subr.mxu0 0.0
  %969 = vmatpush1.msra.mxu0 %v945
  %970 = vmatprep.subr.mxu0 0.0
  %971 = vmatpush1.msra.mxu0 %v946
  %972 = vmatprep.subr.mxu0 0.0
  %973 = vmatpush1.msra.mxu0 %v947
  %974 = vmatprep.subr.mxu0 0.0
  %975 = vmatpush1.msra.mxu0 %v948
  %976 = vmatprep.subr.mxu0 0.0
  %977 = vmatpush1.msra.mxu0 0.0
  %978 = vmatprep.subr.mxu0 0.0
  %979 = vmatpush1.msra.mxu0 0.0
  %980 = vmatprep.subr.mxu0 0.0
  %981 = vmatpush1.msra.mxu0 0.0
  %982 = vmatprep.subr.mxu0 0.0
  %983 = vmatpush1.msra.mxu0 0.0
  %984 = vmatprep.subr.mxu0 0.0
  %985 = vmatpush1.msra.mxu0 0.0
  %986 = vmatprep.subr.mxu0 0.0
  %987 = vmatpush1.msra.mxu0 0.0
  %988 = vmatprep.subr.mxu0 0.0
  %989 = vmatpush1.msra.mxu0 0.0
  %990 = vmatprep.subr.mxu0 0.0
  %991 = vmatpush1.msra.mxu0 0.0
  %992 = vmatprep.subr.mxu0 0.0
  %993 = vmatpush1.msra.mxu0 0.0
  %994 = vmatprep.subr.mxu0 0.0
  %995 = vmatpush1.msra.mxu0 0.0
  %996 = vmatprep.subr.mxu0 0.0
  %997 = vmatpush1.msra.mxu0 0.0
  %998 = vmatprep.subr.mxu0 0.0
  %999 = vmatpush1.msra.mxu0 0.0
  %1000 = vmatprep.subr.mxu0 0.0
  %1001 = vmatpush1.msra.mxu0 0.0
  %1002 = vmatprep.subr.mxu0 0.0
  %1003 = vmatpush1.msra.mxu0 0.0
  %1004 = vmatprep.subr.mxu0 0.0
  %1005 = vmatpush1.msra.mxu0 0.0
  %1006 = vmatprep.subr.mxu0 0.0
  %1007 = vmatpush1.msra.mxu0 0.0
  %1008 = vmatprep.subr.mxu0 0.0
  %1009 = vmatpush1.msra.mxu0 0.0
  %1010 = vmatprep.subr.mxu0 0.0
  %1011 = vmatpush1.msra.mxu0 0.0
  %1012 = vmatprep.subr.mxu0 0.0
  %1013 = vmatpush1.msra.mxu0 0.0
  %1014 = vmatprep.subr.mxu0 0.0
  %1015 = vmatpush1.msra.mxu0 0.0
  %1016 = vmatprep.subr.mxu0 0.0
  %1017 = vmatpush1.msra.mxu0 0.0
  %1018 = vmatprep.subr.mxu0 0.0
  %1019 = vmatpush1.msra.mxu0 0.0
  %1020 = vmatprep.subr.mxu0 0.0
  %1021 = vmatpush1.msra.mxu0 0.0
  %1022 = vmatprep.subr.mxu0 0.0
  %1023 = vmatpush1.msra.mxu0 0.0
  %1024 = vmatprep.mubr.f32.mxu0 0.0
  %1025 = vmatmul.mubr.f32.gmra.mrb[0].mxu0 %v958
  %v1026 = vpop.f32.mrb[0].mxu0
  %v1027 = vadd.f32 %v955, %v1026
  %v1028 = vpop.f32.mrb[0].mxu0
  %1029 = vdwg.mxu0
  %v1030 = vmax.f32 %v1027, 0.0
  %s1031 = scalar_lea.vmem %s10, 64
  %v1032 = vld [vmem:[%s1031] sm:$0xff]
  %v1033 = vld [vmem:[%s1031 + $0x8] sm:$0xff]
  %v1034 = vld [vmem:[%s1031 + $0x10] sm:$0xff]
  %v1035 = vld [vmem:[%s1031 + $0x18] sm:$0xff]
  %v1036 = vld [vmem:[%s1031 + $0x20] sm:$0xff]
  %v1037 = vld [vmem:[%s1031 + $0x28] sm:$0xff]
  %v1038 = vld [vmem:[%s1031 + $0x30] sm:$0xff]
  %v1039 = vld [vmem:[%s1031 + $0x38] sm:$0xff]
  %s1040 = scalar_lea.vmem %s11, 2
  %v1041 = vld [vmem:[%s1040] sm:$0x1]
  %v1043 = vlaneseq
  %v1044 = vshrl.u32 %v1043, 7
  %v1045 = vsub.s32 0, %v1044
  %v1046 = vrot.slane %v1041, %v1045
  %v1049 = vsel %vm277, %v1030, 0
  %1051 = vmatprep.subr.mxu0 0.0
  %1052 = vmatpush1.msra.mxu0 %v1032
  %1053 = vmatprep.subr.mxu0 0.0
  %1054 = vmatpush1.msra.mxu0 %v1033
  %1055 = vmatprep.subr.mxu0 0.0
  %1056 = vmatpush1.msra.mxu0 %v1034
  %1057 = vmatprep.subr.mxu0 0.0
  %1058 = vmatpush1.msra.mxu0 %v1035
  %1059 = vmatprep.subr.mxu0 0.0
  %1060 = vmatpush1.msra.mxu0 %v1036
  %1061 = vmatprep.subr.mxu0 0.0
  %1062 = vmatpush1.msra.mxu0 %v1037
  %1063 = vmatprep.subr.mxu0 0.0
  %1064 = vmatpush1.msra.mxu0 %v1038
  %1065 = vmatprep.subr.mxu0 0.0
  %1066 = vmatpush1.msra.mxu0 %v1039
  %1067 = vmatprep.subr.mxu0 0.0
  %1068 = vmatpush1.msra.mxu0 0.0
  %1069 = vmatprep.subr.mxu0 0.0
  %1070 = vmatpush1.msra.mxu0 0.0
  %1071 = vmatprep.subr.mxu0 0.0
  %1072 = vmatpush1.msra.mxu0 0.0
  %1073 = vmatprep.subr.mxu0 0.0
  %1074 = vmatpush1.msra.mxu0 0.0
  %1075 = vmatprep.subr.mxu0 0.0
  %1076 = vmatpush1.msra.mxu0 0.0
  %1077 = vmatprep.subr.mxu0 0.0
  %1078 = vmatpush1.msra.mxu0 0.0
  %1079 = vmatprep.subr.mxu0 0.0
  %1080 = vmatpush1.msra.mxu0 0.0
  %1081 = vmatprep.subr.mxu0 0.0
  %1082 = vmatpush1.msra.mxu0 0.0
  %1083 = vmatprep.subr.mxu0 0.0
  %1084 = vmatpush1.msra.mxu0 0.0
  %1085 = vmatprep.subr.mxu0 0.0
  %1086 = vmatpush1.msra.mxu0 0.0
  %1087 = vmatprep.subr.mxu0 0.0
  %1088 = vmatpush1.msra.mxu0 0.0
  %1089 = vmatprep.subr.mxu0 0.0
  %1090 = vmatpush1.msra.mxu0 0.0
  %1091 = vmatprep.subr.mxu0 0.0
  %1092 = vmatpush1.msra.mxu0 0.0
  %1093 = vmatprep.subr.mxu0 0.0
  %1094 = vmatpush1.msra.mxu0 0.0
  %1095 = vmatprep.subr.mxu0 0.0
  %1096 = vmatpush1.msra.mxu0 0.0
  %1097 = vmatprep.subr.mxu0 0.0
  %1098 = vmatpush1.msra.mxu0 0.0
  %1099 = vmatprep.subr.mxu0 0.0
  %1100 = vmatpush1.msra.mxu0 0.0
  %1101 = vmatprep.subr.mxu0 0.0
  %1102 = vmatpush1.msra.mxu0 0.0
  %1103 = vmatprep.subr.mxu0 0.0
  %1104 = vmatpush1.msra.mxu0 0.0
  %1105 = vmatprep.subr.mxu0 0.0
  %1106 = vmatpush1.msra.mxu0 0.0
  %1107 = vmatprep.subr.mxu0 0.0
  %1108 = vmatpush1.msra.mxu0 0.0
  %1109 = vmatprep.subr.mxu0 0.0
  %1110 = vmatpush1.msra.mxu0 0.0
  %1111 = vmatprep.subr.mxu0 0.0
  %1112 = vmatpush1.msra.mxu0 0.0
  %1113 = vmatprep.subr.mxu0 0.0
  %1114 = vmatpush1.msra.mxu0 0.0
  %1115 = vmatprep.mubr.f32.mxu0 0.0
  %1116 = vmatmul.mubr.f32.gmra.mrb[0].mxu0 %v1049
  %v1117 = vpop.f32.mrb[0].mxu0
  %v1118 = vadd.f32 %v1046, %v1117
  %v1119 = vpop.f32.mrb[0].mxu0
  %1120 = vdwg.mxu0
  %v1121 = vmax.f32 %v1118, 0.0
  %s1122 = scalar_lea.vmem %s10, 128
  %v1123 = vld [vmem:[%s1122] sm:$0xff]
  %v1124 = vld [vmem:[%s1122 + $0x8] sm:$0xff]
  %v1125 = vld [vmem:[%s1122 + $0x10] sm:$0xff]
  %v1126 = vld [vmem:[%s1122 + $0x18] sm:$0xff]
  %v1127 = vld [vmem:[%s1122 + $0x20] sm:$0xff]
  %v1128 = vld [vmem:[%s1122 + $0x28] sm:$0xff]
  %v1129 = vld [vmem:[%s1122 + $0x30] sm:$0xff]
  %v1130 = vld [vmem:[%s1122 + $0x38] sm:$0xff]
  %s1131 = scalar_lea.vmem %s11, 3
  %v1132 = vld [vmem:[%s1131] sm:$0x1]
  %v1134 = vlaneseq
  %v1135 = vshrl.u32 %v1134, 7
  %v1136 = vsub.s32 0, %v1135
  %v1137 = vrot.slane %v1132, %v1136
  %v1140 = vsel %vm277, %v1121, 0
  %1142 = vmatprep.subr.mxu0 0.0
  %1143 = vmatpush1.msra.mxu0 %v1123
  %1144 = vmatprep.subr.mxu0 0.0
  %1145 = vmatpush1.msra.mxu0 %v1124
  %1146 = vmatprep.subr.mxu0 0.0
  %1147 = vmatpush1.msra.mxu0 %v1125
  %1148 = vmatprep.subr.mxu0 0.0
  %1149 = vmatpush1.msra.mxu0 %v1126
  %1150 = vmatprep.subr.mxu0 0.0
  %1151 = vmatpush1.msra.mxu0 %v1127
  %1152 = vmatprep.subr.mxu0 0.0
  %1153 = vmatpush1.msra.mxu0 %v1128
  %1154 = vmatprep.subr.mxu0 0.0
  %1155 = vmatpush1.msra.mxu0 %v1129
  %1156 = vmatprep.subr.mxu0 0.0
  %1157 = vmatpush1.msra.mxu0 %v1130
  %1158 = vmatprep.subr.mxu0 0.0
  %1159 = vmatpush1.msra.mxu0 0.0
  %1160 = vmatprep.subr.mxu0 0.0
  %1161 = vmatpush1.msra.mxu0 0.0
  %1162 = vmatprep.subr.mxu0 0.0
  %1163 = vmatpush1.msra.mxu0 0.0
  %1164 = vmatprep.subr.mxu0 0.0
  %1165 = vmatpush1.msra.mxu0 0.0
  %1166 = vmatprep.subr.mxu0 0.0
  %1167 = vmatpush1.msra.mxu0 0.0
  %1168 = vmatprep.subr.mxu0 0.0
  %1169 = vmatpush1.msra.mxu0 0.0
  %1170 = vmatprep.subr.mxu0 0.0
  %1171 = vmatpush1.msra.mxu0 0.0
  %1172 = vmatprep.subr.mxu0 0.0
  %1173 = vmatpush1.msra.mxu0 0.0
  %1174 = vmatprep.subr.mxu0 0.0
  %1175 = vmatpush1.msra.mxu0 0.0
  %1176 = vmatprep.subr.mxu0 0.0
  %1177 = vmatpush1.msra.mxu0 0.0
  %1178 = vmatprep.subr.mxu0 0.0
  %1179 = vmatpush1.msra.mxu0 0.0
  %1180 = vmatprep.subr.mxu0 0.0
  %1181 = vmatpush1.msra.mxu0 0.0
  %1182 = vmatprep.subr.mxu0 0.0
  %1183 = vmatpush1.msra.mxu0 0.0
  %1184 = vmatprep.subr.mxu0 0.0
  %1185 = vmatpush1.msra.mxu0 0.0
  %1186 = vmatprep.subr.mxu0 0.0
  %1187 = vmatpush1.msra.mxu0 0.0
  %1188 = vmatprep.subr.mxu0 0.0
  %1189 = vmatpush1.msra.mxu0 0.0
  %1190 = vmatprep.subr.mxu0 0.0
  %1191 = vmatpush1.msra.mxu0 0.0
  %1192 = vmatprep.subr.mxu0 0.0
  %1193 = vmatpush1.msra.mxu0 0.0
  %1194 = vmatprep.subr.mxu0 0.0
  %1195 = vmatpush1.msra.mxu0 0.0
  %1196 = vmatprep.subr.mxu0 0.0
  %1197 = vmatpush1.msra.mxu0 0.0
  %1198 = vmatprep.subr.mxu0 0.0
  %1199 = vmatpush1.msra.mxu0 0.0
  %1200 = vmatprep.subr.mxu0 0.0
  %1201 = vmatpush1.msra.mxu0 0.0
  %1202 = vmatprep.subr.mxu0 0.0
  %1203 = vmatpush1.msra.mxu0 0.0
  %1204 = vmatprep.subr.mxu0 0.0
  %1205 = vmatpush1.msra.mxu0 0.0
  %1206 = vmatprep.mubr.f32.mxu0 0.0
  %1207 = vmatmul.mubr.f32.gmra.mrb[0].mxu0 %v1140
  %v1208 = vpop.f32.mrb[0].mxu0
  %v1209 = vadd.f32 %v1137, %v1208
  %v1210 = vpop.f32.mrb[0].mxu0
  %1211 = vdwg.mxu0
  %v1212 = vmax.f32 %v1209, 0.0
  %s1213 = scalar_lea.vmem %s10, 192
  %v1214 = vld [vmem:[%s1213] sm:$0xff]
  %v1215 = vld [vmem:[%s1213 + $0x8] sm:$0xff]
  %v1216 = vld [vmem:[%s1213 + $0x10] sm:$0xff]
  %v1217 = vld [vmem:[%s1213 + $0x18] sm:$0xff]
  %v1218 = vld [vmem:[%s1213 + $0x20] sm:$0xff]
  %v1219 = vld [vmem:[%s1213 + $0x28] sm:$0xff]
  %v1220 = vld [vmem:[%s1213 + $0x30] sm:$0xff]
  %v1221 = vld [vmem:[%s1213 + $0x38] sm:$0xff]
  %s1222 = scalar_lea.vmem %s11, 4
  %v1223 = vld [vmem:[%s1222] sm:$0x1]
  %v1225 = vlaneseq
  %v1226 = vshrl.u32 %v1225, 7
  %v1227 = vsub.s32 0, %v1226
  %v1228 = vrot.slane %v1223, %v1227
  %v1231 = vsel %vm277, %v1212, 0
  %1233 = vmatprep.subr.mxu0 0.0
  %1234 = vmatpush1.msra.mxu0 %v1214
  %1235 = vmatprep.subr.mxu0 0.0
  %1236 = vmatpush1.msra.mxu0 %v1215
  %1237 = vmatprep.subr.mxu0 0.0
  %1238 = vmatpush1.msra.mxu0 %v1216
  %1239 = vmatprep.subr.mxu0 0.0
  %1240 = vmatpush1.msra.mxu0 %v1217
  %1241 = vmatprep.subr.mxu0 0.0
  %1242 = vmatpush1.msra.mxu0 %v1218
  %1243 = vmatprep.subr.mxu0 0.0
  %1244 = vmatpush1.msra.mxu0 %v1219
  %1245 = vmatprep.subr.mxu0 0.0
  %1246 = vmatpush1.msra.mxu0 %v1220
  %1247 = vmatprep.subr.mxu0 0.0
  %1248 = vmatpush1.msra.mxu0 %v1221
  %1249 = vmatprep.subr.mxu0 0.0
  %1250 = vmatpush1.msra.mxu0 0.0
  %1251 = vmatprep.subr.mxu0 0.0
  %1252 = vmatpush1.msra.mxu0 0.0
  %1253 = vmatprep.subr.mxu0 0.0
  %1254 = vmatpush1.msra.mxu0 0.0
  %1255 = vmatprep.subr.mxu0 0.0
  %1256 = vmatpush1.msra.mxu0 0.0
  %1257 = vmatprep.subr.mxu0 0.0
  %1258 = vmatpush1.msra.mxu0 0.0
  %1259 = vmatprep.subr.mxu0 0.0
  %1260 = vmatpush1.msra.mxu0 0.0
  %1261 = vmatprep.subr.mxu0 0.0
  %1262 = vmatpush1.msra.mxu0 0.0
  %1263 = vmatprep.subr.mxu0 0.0
  %1264 = vmatpush1.msra.mxu0 0.0
  %1265 = vmatprep.subr.mxu0 0.0
  %1266 = vmatpush1.msra.mxu0 0.0
  %1267 = vmatprep.subr.mxu0 0.0
  %1268 = vmatpush1.msra.mxu0 0.0
  %1269 = vmatprep.subr.mxu0 0.0
  %1270 = vmatpush1.msra.mxu0 0.0
  %1271 = vmatprep.subr.mxu0 0.0
  %1272 = vmatpush1.msra.mxu0 0.0
  %1273 = vmatprep.subr.mxu0 0.0
  %1274 = vmatpush1.msra.mxu0 0.0
  %1275 = vmatprep.subr.mxu0 0.0
  %1276 = vmatpush1.msra.mxu0 0.0
  %1277 = vmatprep.subr.mxu0 0.0
  %1278 = vmatpush1.msra.mxu0 0.0
  %1279 = vmatprep.subr.mxu0 0.0
  %1280 = vmatpush1.msra.mxu0 0.0
  %1281 = vmatprep.subr.mxu0 0.0
  %1282 = vmatpush1.msra.mxu0 0.0
  %1283 = vmatprep.subr.mxu0 0.0
  %1284 = vmatpush1.msra.mxu0 0.0
  %1285 = vmatprep.subr.mxu0 0.0
  %1286 = vmatpush1.msra.mxu0 0.0
  %1287 = vmatprep.subr.mxu0 0.0
  %1288 = vmatpush1.msra.mxu0 0.0
  %1289 = vmatprep.subr.mxu0 0.0
  %1290 = vmatpush1.msra.mxu0 0.0
  %1291 = vmatprep.subr.mxu0 0.0
  %1292 = vmatpush1.msra.mxu0 0.0
  %1293 = vmatprep.subr.mxu0 0.0
  %1294 = vmatpush1.msra.mxu0 0.0
  %1295 = vmatprep.subr.mxu0 0.0
  %1296 = vmatpush1.msra.mxu0 0.0
  %1297 = vmatprep.mubr.f32.mxu0 0.0
  %1298 = vmatmul.mubr.f32.gmra.mrb[0].mxu0 %v1231
  %v1299 = vpop.f32.mrb[0].mxu0
  %v1300 = vadd.f32 %v1228, %v1299
  %v1301 = vpop.f32.mrb[0].mxu0
  %1302 = vdwg.mxu0
  %v1303 = vmax.f32 %v1300, 0.0
  %s1304 = scalar_lea.vmem %s10, 256
  %v1305 = vld [vmem:[%s1304] sm:$0xff]
  %v1306 = vld [vmem:[%s1304 + $0x8] sm:$0xff]
  %v1307 = vld [vmem:[%s1304 + $0x10] sm:$0xff]
  %v1308 = vld [vmem:[%s1304 + $0x18] sm:$0xff]
  %v1309 = vld [vmem:[%s1304 + $0x20] sm:$0xff]
  %v1310 = vld [vmem:[%s1304 + $0x28] sm:$0xff]
  %v1311 = vld [vmem:[%s1304 + $0x30] sm:$0xff]
  %v1312 = vld [vmem:[%s1304 + $0x38] sm:$0xff]
  %s1313 = scalar_lea.vmem %s11, 5
  %v1314 = vld [vmem:[%s1313] sm:$0x1]
  %v1316 = vlaneseq
  %v1317 = vshrl.u32 %v1316, 7
  %v1318 = vsub.s32 0, %v1317
  %v1319 = vrot.slane %v1314, %v1318
  %v1322 = vsel %vm277, %v1303, 0
  %1324 = vmatprep.subr.mxu0 0.0
  %1325 = vmatpush1.msra.mxu0 %v1305
  %1326 = vmatprep.subr.mxu0 0.0
  %1327 = vmatpush1.msra.mxu0 %v1306
  %1328 = vmatprep.subr.mxu0 0.0
  %1329 = vmatpush1.msra.mxu0 %v1307
  %1330 = vmatprep.subr.mxu0 0.0
  %1331 = vmatpush1.msra.mxu0 %v1308
  %1332 = vmatprep.subr.mxu0 0.0
  %1333 = vmatpush1.msra.mxu0 %v1309
  %1334 = vmatprep.subr.mxu0 0.0
  %1335 = vmatpush1.msra.mxu0 %v1310
  %1336 = vmatprep.subr.mxu0 0.0
  %1337 = vmatpush1.msra.mxu0 %v1311
  %1338 = vmatprep.subr.mxu0 0.0
  %1339 = vmatpush1.msra.mxu0 %v1312
  %1340 = vmatprep.subr.mxu0 0.0
  %1341 = vmatpush1.msra.mxu0 0.0
  %1342 = vmatprep.subr.mxu0 0.0
  %1343 = vmatpush1.msra.mxu0 0.0
  %1344 = vmatprep.subr.mxu0 0.0
  %1345 = vmatpush1.msra.mxu0 0.0
  %1346 = vmatprep.subr.mxu0 0.0
  %1347 = vmatpush1.msra.mxu0 0.0
  %1348 = vmatprep.subr.mxu0 0.0
  %1349 = vmatpush1.msra.mxu0 0.0
  %1350 = vmatprep.subr.mxu0 0.0
  %1351 = vmatpush1.msra.mxu0 0.0
  %1352 = vmatprep.subr.mxu0 0.0
  %1353 = vmatpush1.msra.mxu0 0.0
  %1354 = vmatprep.subr.mxu0 0.0
  %1355 = vmatpush1.msra.mxu0 0.0
  %1356 = vmatprep.subr.mxu0 0.0
  %1357 = vmatpush1.msra.mxu0 0.0
  %1358 = vmatprep.subr.mxu0 0.0
  %1359 = vmatpush1.msra.mxu0 0.0
  %1360 = vmatprep.subr.mxu0 0.0
  %1361 = vmatpush1.msra.mxu0 0.0
  %1362 = vmatprep.subr.mxu0 0.0
  %1363 = vmatpush1.msra.mxu0 0.0
  %1364 = vmatprep.subr.mxu0 0.0
  %1365 = vmatpush1.msra.mxu0 0.0
  %1366 = vmatprep.subr.mxu0 0.0
  %1367 = vmatpush1.msra.mxu0 0.0
  %1368 = vmatprep.subr.mxu0 0.0
  %1369 = vmatpush1.msra.mxu0 0.0
  %1370 = vmatprep.subr.mxu0 0.0
  %1371 = vmatpush1.msra.mxu0 0.0
  %1372 = vmatprep.subr.mxu0 0.0
  %1373 = vmatpush1.msra.mxu0 0.0
  %1374 = vmatprep.subr.mxu0 0.0
  %1375 = vmatpush1.msra.mxu0 0.0
  %1376 = vmatprep.subr.mxu0 0.0
  %1377 = vmatpush1.msra.mxu0 0.0
  %1378 = vmatprep.subr.mxu0 0.0
  %1379 = vmatpush1.msra.mxu0 0.0
  %1380 = vmatprep.subr.mxu0 0.0
  %1381 = vmatpush1.msra.mxu0 0.0
  %1382 = vmatprep.subr.mxu0 0.0
  %1383 = vmatpush1.msra.mxu0 0.0
  %1384 = vmatprep.subr.mxu0 0.0
  %1385 = vmatpush1.msra.mxu0 0.0
  %1386 = vmatprep.subr.mxu0 0.0
  %1387 = vmatpush1.msra.mxu0 0.0
  %1388 = vmatprep.mubr.f32.mxu0 0.0
  %1389 = vmatmul.mubr.f32.gmra.mrb[0].mxu0 %v1322
  %v1390 = vpop.f32.mrb[0].mxu0
  %v1391 = vadd.f32 %v1319, %v1390
  %v1392 = vpop.f32.mrb[0].mxu0
  %1393 = vdwg.mxu0
  %1395 = vrot.lane.b32.xlu0 %v1391, 127
  %v1396 = vpop.permute.xlu0 %1395
  %v1398 = vsub.f32 %v1391, %v1396
  %v1399 = vmul.f32 %v1398, 1.442695
  %v1400 = vpow.pop %v1399
  %v1401 = vadd.f32 %v1400, 1.0
  %v1402 = vrcp.pop %v1401
  %v1403 = vmul.f32 1.0, %v1402
  %v1404 = vsub.f32 1.0, %v1403
  %1406 = vrot.lane.b32.xlu0 %v1403, 1
  %v1407 = vpop.permute.xlu0 %1406
  %vm1409 = vcmask 7168
  %v1410 = vsel %vm1409, %v1404, %v1407
  %vm1411 = vcmask 15360
  %1412 = vst.msk [vmem:[%s12] sm:$0xff] %vm1411, %v1410
  // Predicated region
  $region50: #{model_forward.1} parent=0 // pred_check
    _
  $region51: #{model_forward.1} parent=0 // pred_check_branch
    %1414 = sbr.rel (0) target = $region53
  $region52: #{model_forward.1} parent=0 // pred_region
    _
  $region53: #{model_forward.1} parent=0 // pred_fallthru
    _
  // Predicated region
  $region54: #{model_forward.1} parent=0 // pred_check
    _
  $region55: #{model_forward.1} parent=0 // pred_check_branch
    %1416 = sbr.rel (0) target = $region57
  $region56: #{model_forward.1} parent=0 // pred_region
    _
  $region57: #{model_forward.1} parent=0 // pred_fallthru
    _

</llo_original>
